<compile_context>
chip_gen: v7x
topology: tpu7x:2x2x1
jax: 0.10.0
libtpu: 0.0.40
codegen_flags: <defaults>
</compile_context>

<pallas_src>
import jax
import jax.numpy as jnp
from jax import lax
from jax.experimental import pallas as pl
from jax.experimental.pallas import tpu as pltpu


def _mlp_kernel(drugs_ref, cell_ref,
                w1d_ref, b1d_ref, w2d_ref, b2d_ref, w3d_ref, b3d_ref,
                w1c_ref, b1c_ref, w2c_ref, b2c_ref, w3c_ref, b3c_ref,
                wa_ref, wb_ref, sel_ref, boff_ref,
                wp1a_ref, wp1b_ref, bp1_ref, wp2_ref, bp2_ref, wp3t_ref, bp3_ref,
                out_ref):
    f32 = jnp.float32
    bf16 = jnp.bfloat16
    tb = cell_ref.shape[0]              # batch rows per grid step (static)

    def dot(x, w_ref):
        # bf16 operands on the MXU, f32 accumulation.
        return jnp.dot(x.astype(bf16), w_ref[...], preferred_element_type=f32)

    def block_nn(x, w1, b1, w2, b2, w3, b3):
        # Block_nn: Linear -> BN -> ReLU -> Linear -> BN -> ReLU -> Linear
        # (eval-mode BatchNorm folded into w/b on the host side).
        h = jnp.maximum(dot(x, w1) + b1[...], 0.0)
        h = jnp.maximum(dot(h, w2) + b2[...], 0.0)
        return dot(h, w3) + b3[...]

    # Fused drug tower: the wrapper interleaves drug_a / drug_b per tile, so one
    # (2*tb, drug_dim) pass replaces two (tb, drug_dim) passes (half the MXU
    # weight pushes, double the effective M).
    e12 = block_nn(drugs_ref[...], w1d_ref, b1d_ref, w2d_ref, b2d_ref,
                   w3d_ref, b3d_ref)
    e1 = e12[:tb]                       # drug_a embeddings
    e2 = e12[tb:]                       # drug_b embeddings
    e3 = block_nn(cell_ref[...], w1c_ref, b1c_ref, w2c_ref, b2c_ref,
                  w3c_ref, b3c_ref)

    # Bilinear permutation op (matches torch semantics):
    #   lat[b,q] = sum_p (sum_k W[p,q,k] e1[b,k]) * (sum_k W[q,p,k] e2[b,k]) + off[q]
    # Flattened (H, H*H) weight views + a 0/1 selector matmul keep everything on
    # the MXU (no in-kernel reshape / cross-lane reduce).  The elementwise
    # product and the selector reduction stay in f32.
    a1 = dot(e1, wa_ref)                                # (tb, H*H), flat p*H+q
    a2 = dot(e2, wb_ref)                                # (tb, H*H)
    lat = jnp.dot(a1 * a2, sel_ref[...],
                  preferred_element_type=f32) + boff_ref[...]        # (tb, H)

    # fit_pred with cat([lat, e3], dim=1) split across the first Linear layer.
    h = jnp.maximum(dot(lat, wp1a_ref) + dot(e3, wp1b_ref) + bp1_ref[...], 0.0)
    h = jnp.maximum(dot(h, wp2_ref) + bp2_ref[...], 0.0)

    # Final Linear(hid_dim_1 -> 1) computed as (1, hid_dim_1) contracted against
    # h's feature axis so the result is already (1, tb): lane-dense stores.
    pred = lax.dot_general(wp3t_ref[...], h.astype(bf16),
                           dimension_numbers=(((1,), (1,)), ((), ())),
                           preferred_element_type=f32)               # (1, tb)
    out_ref[...] = jax.nn.sigmoid(pred + bp3_ref[...])               # regress=False


def _round_up(x, m):
    return (x + m - 1) // m * m


def _prep_params(params):
    """Cast matmul weights to bf16 (host side) and pre-transpose the final Linear."""
    (w1d, b1d, w2d, b2d, w3d, b3d,
     w1c, b1c, w2c, b2c, w3c, b3c,
     wa, wb, sel, boff,
     wp1a, wp1b, bp1, wp2, bp2, wp3, bp3) = params
    bf = lambda x: x.astype(jnp.bfloat16)
    return (bf(w1d), b1d, bf(w2d), b2d, bf(w3d), b3d,
            bf(w1c), b1c, bf(w2c), b2c, bf(w3c), b3c,
            bf(wa), bf(wb), sel, boff,
            bf(wp1a), bf(wp1b), bp1, bf(wp2), bp2, bf(wp3.T), bp3)


def mlp_drug_cell_permutate(drug_a, drug_b, cell, params, *, tile_b=512,
                            vmem_limit_bytes=48 * 1024 * 1024):
    """Fused forward pass.

    tile_b: requested batch rows per grid step.  The wrapper clamps it so the
    dominant f32 bilinear intermediates (3 * tile_b * H*H * 4 bytes) stay under
    ~8 MiB, which keeps total VMEM (double-buffered bf16 inputs + resident
    weights + scratch) comfortably inside v5e/v6e/v7x limits.  Batches are
    zero-padded to a multiple of the tile (rows are independent in eval mode,
    so padding is safe).
    """
    B, drug_dim = drug_a.shape
    cell_dim = cell.shape[1]
    H = params[4].shape[1]               # w3d: (hid_dim_1 // 2, hid_dim)

    # Clamp the tile so the (tile_b, H*H) f32 intermediates fit the VMEM budget.
    bilinear_budget = 8 * 1024 * 1024
    max_tb = max(128, (bilinear_budget // (3 * 4 * H * H)) // 128 * 128)
    tile_b = min(tile_b, max_tb)

    if B <= tile_b:                       # single tile: any multiple of 8 works
        tb = max(8, _round_up(B, 8))
        B_pad = tb
    else:                                 # multi-tile: lane-dense output needs
        tb = _round_up(tile_b, 128)       # the tile to be a multiple of 128
        B_pad = _round_up(B, tb)
    num_tiles = B_pad // tb

    def pad_rows(x):
        return jnp.pad(x, ((0, B_pad - B), (0, 0))) if B_pad != B else x

    bf16 = jnp.bfloat16
    da = pad_rows(drug_a).astype(bf16)
    db = pad_rows(drug_b).astype(bf16)
    ce = pad_rows(cell).astype(bf16)

    # Interleave the two drug inputs per tile so the drug tower runs once per
    # grid step on a (2*tb, drug_dim) block.
    drugs = jnp.concatenate(
        [da.reshape(num_tiles, tb, drug_dim), db.reshape(num_tiles, tb, drug_dim)],
        axis=1).reshape(num_tiles * 2 * tb, drug_dim)

    kparams = _prep_params(params)

    data_specs = [
        pl.BlockSpec((2 * tb, drug_dim), lambda i: (i, 0)),
        pl.BlockSpec((tb, cell_dim), lambda i: (i, 0)),
    ]
    # Constant index_map -> weights are DMA'd once and kept resident (revisit).
    weight_specs = [pl.BlockSpec(w.shape, lambda i: (0, 0)) for w in kparams]

    # Advisory cost estimate so XLA schedules producers/consumers around us.
    hid1 = params[0].shape[1]           # w1d: (drug_dim, hid_dim_1)
    hid_half = params[2].shape[1]       # w2d: (hid_dim_1, hid_dim_1 // 2)
    per_row = (2 * (drug_dim * hid1 + hid1 * hid_half + hid_half * H)
               + (cell_dim * hid1 + hid1 * hid_half + hid_half * H)
               + 3 * H * H * H + 2 * H * H + H * hid1 + hid1)
    cost = pl.CostEstimate(
        flops=int(2 * B_pad * per_row),
        transcendentals=int(B_pad),
        bytes_accessed=int(drugs.size * 2 + ce.size * 2 + B_pad * 4
                           + sum(int(p.size) * p.dtype.itemsize for p in kparams)))

    out = pl.pallas_call(
        _mlp_kernel,
        out_shape=jax.ShapeDtypeStruct((1, B_pad), jnp.float32),
        grid_spec=pltpu.PrefetchScalarGridSpec(
            num_scalar_prefetch=0,
            grid=(num_tiles,),
            in_specs=data_specs + weight_specs,
            out_specs=pl.BlockSpec((1, tb), lambda i: (0, i)),
        ),
        compiler_params=pltpu.CompilerParams(
            dimension_semantics=("parallel",),
            vmem_limit_bytes=vmem_limit_bytes),
        cost_estimate=cost,
    )(drugs, ce, *kparams)

    return out.reshape(B_pad, 1)[:B]


def init_params(key, drug_dim, cell_dim, hid_dim, hid_dim_1):
    H = hid_dim
    f32 = jnp.float32

    def linear(k, fan_in, fan_out):
        k1, k2 = jax.random.split(k)
        bound = 1.0 / float(fan_in) ** 0.5
        w = jax.random.uniform(k1, (fan_in, fan_out), f32, -bound, bound)
        b = jax.random.uniform(k2, (1, fan_out), f32, -bound, bound)
        return w, b

    keys = jax.random.split(key, 12)
    # eval-mode BatchNorm1d with running_mean=0, running_var=1, gamma=1, beta=0:
    # y = x / sqrt(1 + eps)  -> fold into preceding Linear.
    bn_scale = 1.0 / (1.0 + 1e-5) ** 0.5

    # drug_emb = Block_nn(drug_dim, hid_dim_1, hid_dim)
    w1d, b1d = linear(keys[0], drug_dim, hid_dim_1)
    w2d, b2d = linear(keys[1], hid_dim_1, hid_dim_1 // 2)
    w3d, b3d = linear(keys[2], hid_dim_1 // 2, H)
    w1d, b1d = w1d * bn_scale, b1d * bn_scale
    w2d, b2d = w2d * bn_scale, b2d * bn_scale

    # cell_emb = Block_nn(cell_dim, hid_dim_1, hid_dim)
    w1c, b1c = linear(keys[3], cell_dim, hid_dim_1)
    w2c, b2c = linear(keys[4], hid_dim_1, hid_dim_1 // 2)
    w3c, b3c = linear(keys[5], hid_dim_1 // 2, H)
    w1c, b1c = w1c * bn_scale, b1c * bn_scale
    w2c, b2c = w2c * bn_scale, b2c * bn_scale

    # bilinear_weights = 0.01*randn(H,H,H) + stack_of_eye(H)
    W = (0.01 * jax.random.normal(keys[6], (H, H, H), f32)
         + jnp.eye(H, dtype=f32)[None, :, :])
    boff = (0.01 * jax.random.normal(keys[7], (H,), f32)).reshape(1, H)
    wa = jnp.transpose(W, (2, 0, 1)).reshape(H, H * H)   # wa[k, p*H+q] = W[p, q, k]
    wb = jnp.transpose(W, (2, 1, 0)).reshape(H, H * H)   # wb[k, p*H+q] = W[q, p, k]
    sel = jnp.tile(jnp.eye(H, dtype=f32), (H, 1))        # (H*H, H), sel[p*H+q, q] = 1

    # fit_pred: Linear(2H -> H), ReLU, Dropout(eval), Linear(H -> hid_dim_1),
    #           ReLU, Dropout(eval), Linear(hid_dim_1 -> 1)
    wp1, bp1 = linear(keys[8], 2 * H, H)
    wp1a, wp1b = wp1[:H], wp1[H:]
    wp2, bp2 = linear(keys[9], H, hid_dim_1)
    wp3, bp3 = linear(keys[10], hid_dim_1, 1)

    return (w1d, b1d, w2d, b2d, w3d, b3d,
            w1c, b1c, w2c, b2c, w3c, b3c,
            wa, wb, sel, boff,
            wp1a, wp1b, bp1, wp2, bp2, wp3, bp3)


def reference_forward(drug_a, drug_b, cell, params, hid_dim):
    """Plain-JAX f32 reference mirroring the torch forward (correctness check)."""
    (w1d, b1d, w2d, b2d, w3d, b3d,
     w1c, b1c, w2c, b2c, w3c, b3c,
     wa, wb, sel, boff,
     wp1a, wp1b, bp1, wp2, bp2, wp3, bp3) = params
    H = hid_dim

    def block(x, w1, b1, w2, b2, w3, b3):
        h = jax.nn.relu(x @ w1 + b1)
        h = jax.nn.relu(h @ w2 + b2)
        return h @ w3 + b3

    e1 = block(drug_a, w1d, b1d, w2d, b2d, w3d, b3d)
    e2 = block(drug_b, w1d, b1d, w2d, b2d, w3d, b3d)
    e3 = block(cell, w1c, b1c, w2c, b2c, w3c, b3c)

    # reconstruct the 3-D bilinear tensor and apply the torch formulation
    W3 = jnp.transpose(wa.reshape(H, H, H), (1, 2, 0))   # W3[p,q,k]
    A1 = jnp.einsum('bk,pqk->bpq', e1, W3)
    A2 = jnp.einsum('bk,qpk->bpq', e2, W3)
    lat = (A1 * A2).sum(axis=1) + boff

    emb = jnp.concatenate([lat, e3], axis=1)
    h = jax.nn.relu(emb @ jnp.concatenate([wp1a, wp1b], axis=0) + bp1)
    h = jax.nn.relu(h @ wp2 + bp2)
    return jax.nn.sigmoid(h @ wp3 + bp3)


if __name__ == "__main__":
    drug_dim, cell_dim, hid_dim, hid_dim_1 = 64, 128, 32, 64

    key = jax.random.PRNGKey(0)
    k_data, k_params = jax.random.split(key)
    params = init_params(k_params, drug_dim, cell_dim, hid_dim, hid_dim_1)

    # Case 1: tiny batch (single tile, clamped tile).  Case 2: B=260 with
    # tile_b=128 -> exercises zero-padding, the multi-tile grid, and the
    # lane-dense transposed output path.
    for B, tb in ((8, 512), (260, 128)):
        kd, kb, kc = jax.random.split(jax.random.fold_in(k_data, B), 3)
        drug_a = jax.random.normal(kd, (B, drug_dim), jnp.float32)
        drug_b = jax.random.normal(kb, (B, drug_dim), jnp.float32)
        cell = jax.random.normal(kc, (B, cell_dim), jnp.float32)

        out = jax.block_until_ready(
            mlp_drug_cell_permutate(drug_a, drug_b, cell, params, tile_b=tb))
        ref = reference_forward(drug_a, drug_b, cell, params, hid_dim)

        assert out.shape == (B, 1)
        # bf16 matmul operands (f32 accumulation) -> loosen tolerance vs f32 ref.
        assert jnp.allclose(out, ref, atol=2e-2, rtol=2e-2), (
            B, float(jnp.max(jnp.abs(out - ref))))

    print("KERNEL_OK")
</pallas_src>

<mosaic_0001>
module attributes {stable_mosaic.version = 11 : i64} {
  func.func @_mlp_kernel(%arg0: i32, %arg1: memref<16x64xbf16, #tpu.memory_space<vmem>>, %arg2: memref<8x128xbf16, #tpu.memory_space<vmem>>, %arg3: memref<64x64xbf16, #tpu.memory_space<vmem>>, %arg4: memref<1x64xf32, #tpu.memory_space<vmem>>, %arg5: memref<64x32xbf16, #tpu.memory_space<vmem>>, %arg6: memref<1x32xf32, #tpu.memory_space<vmem>>, %arg7: memref<32x32xbf16, #tpu.memory_space<vmem>>, %arg8: memref<1x32xf32, #tpu.memory_space<vmem>>, %arg9: memref<128x64xbf16, #tpu.memory_space<vmem>>, %arg10: memref<1x64xf32, #tpu.memory_space<vmem>>, %arg11: memref<64x32xbf16, #tpu.memory_space<vmem>>, %arg12: memref<1x32xf32, #tpu.memory_space<vmem>>, %arg13: memref<32x32xbf16, #tpu.memory_space<vmem>>, %arg14: memref<1x32xf32, #tpu.memory_space<vmem>>, %arg15: memref<32x1024xbf16, #tpu.memory_space<vmem>>, %arg16: memref<32x1024xbf16, #tpu.memory_space<vmem>>, %arg17: memref<1024x32xf32, #tpu.memory_space<vmem>>, %arg18: memref<1x32xf32, #tpu.memory_space<vmem>>, %arg19: memref<32x32xbf16, #tpu.memory_space<vmem>>, %arg20: memref<32x32xbf16, #tpu.memory_space<vmem>>, %arg21: memref<1x32xf32, #tpu.memory_space<vmem>>, %arg22: memref<32x64xbf16, #tpu.memory_space<vmem>>, %arg23: memref<1x64xf32, #tpu.memory_space<vmem>>, %arg24: memref<1x64xbf16, #tpu.memory_space<vmem>>, %arg25: memref<1x1xf32, #tpu.memory_space<vmem>>, %arg26: memref<1x8xf32, #tpu.memory_space<vmem>>) attributes {dimension_semantics = [#tpu.dimension_semantics<parallel>], iteration_bounds = array<i64: 1>, scalar_prefetch = 0 : i64, scratch_operands = 0 : i64, tpu.core_type = #tpu.core_type<tc>, window_params = [{transform_indices = @transform_0, window_bounds = array<i64: 16, 64>}, {transform_indices = @transform_1, window_bounds = array<i64: 8, 128>}, {pipeline_mode = #tpu.pipeline_mode<synchronous>, transform_indices = @transform_2, window_bounds = array<i64: 64, 64>}, {pipeline_mode = #tpu.pipeline_mode<synchronous>, transform_indices = @transform_3, window_bounds = array<i64: 1, 64>}, {pipeline_mode = #tpu.pipeline_mode<synchronous>, transform_indices = @transform_4, window_bounds = array<i64: 64, 32>}, {pipeline_mode = #tpu.pipeline_mode<synchronous>, transform_indices = @transform_5, window_bounds = array<i64: 1, 32>}, {pipeline_mode = #tpu.pipeline_mode<synchronous>, transform_indices = @transform_6, window_bounds = array<i64: 32, 32>}, {pipeline_mode = #tpu.pipeline_mode<synchronous>, transform_indices = @transform_7, window_bounds = array<i64: 1, 32>}, {pipeline_mode = #tpu.pipeline_mode<synchronous>, transform_indices = @transform_8, window_bounds = array<i64: 128, 64>}, {pipeline_mode = #tpu.pipeline_mode<synchronous>, transform_indices = @transform_9, window_bounds = array<i64: 1, 64>}, {pipeline_mode = #tpu.pipeline_mode<synchronous>, transform_indices = @transform_10, window_bounds = array<i64: 64, 32>}, {pipeline_mode = #tpu.pipeline_mode<synchronous>, transform_indices = @transform_11, window_bounds = array<i64: 1, 32>}, {pipeline_mode = #tpu.pipeline_mode<synchronous>, transform_indices = @transform_12, window_bounds = array<i64: 32, 32>}, {pipeline_mode = #tpu.pipeline_mode<synchronous>, transform_indices = @transform_13, window_bounds = array<i64: 1, 32>}, {pipeline_mode = #tpu.pipeline_mode<synchronous>, transform_indices = @transform_14, window_bounds = array<i64: 32, 1024>}, {pipeline_mode = #tpu.pipeline_mode<synchronous>, transform_indices = @transform_15, window_bounds = array<i64: 32, 1024>}, {pipeline_mode = #tpu.pipeline_mode<synchronous>, transform_indices = @transform_16, window_bounds = array<i64: 1024, 32>}, {pipeline_mode = #tpu.pipeline_mode<synchronous>, transform_indices = @transform_17, window_bounds = array<i64: 1, 32>}, {pipeline_mode = #tpu.pipeline_mode<synchronous>, transform_indices = @transform_18, window_bounds = array<i64: 32, 32>}, {pipeline_mode = #tpu.pipeline_mode<synchronous>, transform_indices = @transform_19, window_bounds = array<i64: 32, 32>}, {pipeline_mode = #tpu.pipeline_mode<synchronous>, transform_indices = @transform_20, window_bounds = array<i64: 1, 32>}, {pipeline_mode = #tpu.pipeline_mode<synchronous>, transform_indices = @transform_21, window_bounds = array<i64: 32, 64>}, {pipeline_mode = #tpu.pipeline_mode<synchronous>, transform_indices = @transform_22, window_bounds = array<i64: 1, 64>}, {pipeline_mode = #tpu.pipeline_mode<synchronous>, transform_indices = @transform_23, window_bounds = array<i64: 1, 64>}, {pipeline_mode = #tpu.pipeline_mode<synchronous>, transform_indices = @transform_24, window_bounds = array<i64: 1, 1>}, {transform_indices = @transform_25, window_bounds = array<i64: 1, 8>}]} {
    %c0 = arith.constant 0 : index
    %c0_0 = arith.constant 0 : index
    %0 = vector.load %arg1[%c0, %c0_0] : memref<16x64xbf16, #tpu.memory_space<vmem>>, vector<16x64xbf16>
    %c0_1 = arith.constant 0 : index
    %c0_2 = arith.constant 0 : index
    %1 = vector.load %arg3[%c0_1, %c0_2] : memref<64x64xbf16, #tpu.memory_space<vmem>>, vector<64x64xbf16>
    %cst = arith.constant dense<0.000000e+00> : vector<16x64xf32>
    %2 = tpu.matmul %0, %1, %cst {dimension_numbers = #tpu.dot_dimension_numbers<[1], [0], [0], [1], [0, 0, 1, 1], [], []>} : vector<16x64xbf16>, vector<64x64xbf16>, vector<16x64xf32> -> vector<16x64xf32>
    %c0_3 = arith.constant 0 : index
    %c0_4 = arith.constant 0 : index
    %3 = vector.load %arg4[%c0_3, %c0_4] : memref<1x64xf32, #tpu.memory_space<vmem>>, vector<1x64xf32>
    %4 = vector.broadcast %3 : vector<1x64xf32> to vector<16x64xf32>
    %5 = arith.addf %2, %4 : vector<16x64xf32>
    %cst_5 = arith.constant 0.000000e+00 : f32
    %6 = vector.broadcast %cst_5 : f32 to vector<16x64xf32>
    %7 = arith.maximumf %5, %6 : vector<16x64xf32>
    %8 = arith.truncf %7 : vector<16x64xf32> to vector<16x64xbf16>
    %c0_6 = arith.constant 0 : index
    %c0_7 = arith.constant 0 : index
    %9 = vector.load %arg5[%c0_6, %c0_7] : memref<64x32xbf16, #tpu.memory_space<vmem>>, vector<64x32xbf16>
    %cst_8 = arith.constant dense<0.000000e+00> : vector<16x32xf32>
    %10 = tpu.matmul %8, %9, %cst_8 {dimension_numbers = #tpu.dot_dimension_numbers<[1], [0], [0], [1], [0, 0, 1, 1], [], []>} : vector<16x64xbf16>, vector<64x32xbf16>, vector<16x32xf32> -> vector<16x32xf32>
    %c0_9 = arith.constant 0 : index
    %c0_10 = arith.constant 0 : index
    %11 = vector.load %arg6[%c0_9, %c0_10] : memref<1x32xf32, #tpu.memory_space<vmem>>, vector<1x32xf32>
    %12 = vector.broadcast %11 : vector<1x32xf32> to vector<16x32xf32>
    %13 = arith.addf %10, %12 : vector<16x32xf32>
    %cst_11 = arith.constant 0.000000e+00 : f32
    %14 = vector.broadcast %cst_11 : f32 to vector<16x32xf32>
    %15 = arith.maximumf %13, %14 : vector<16x32xf32>
    %16 = arith.truncf %15 : vector<16x32xf32> to vector<16x32xbf16>
    %c0_12 = arith.constant 0 : index
    %c0_13 = arith.constant 0 : index
    %17 = vector.load %arg7[%c0_12, %c0_13] : memref<32x32xbf16, #tpu.memory_space<vmem>>, vector<32x32xbf16>
    %cst_14 = arith.constant dense<0.000000e+00> : vector<16x32xf32>
    %18 = tpu.matmul %16, %17, %cst_14 {dimension_numbers = #tpu.dot_dimension_numbers<[1], [0], [0], [1], [0, 0, 1, 1], [], []>} : vector<16x32xbf16>, vector<32x32xbf16>, vector<16x32xf32> -> vector<16x32xf32>
    %c0_15 = arith.constant 0 : index
    %c0_16 = arith.constant 0 : index
    %19 = vector.load %arg8[%c0_15, %c0_16] : memref<1x32xf32, #tpu.memory_space<vmem>>, vector<1x32xf32>
    %20 = vector.broadcast %19 : vector<1x32xf32> to vector<16x32xf32>
    %21 = arith.addf %18, %20 : vector<16x32xf32>
    %22 = vector.extract_strided_slice %21 {offsets = [0, 0], sizes = [8, 32], strides = [1, 1]} : vector<16x32xf32> to vector<8x32xf32>
    %23 = vector.extract_strided_slice %21 {offsets = [8, 0], sizes = [8, 32], strides = [1, 1]} : vector<16x32xf32> to vector<8x32xf32>
    %c0_17 = arith.constant 0 : index
    %c0_18 = arith.constant 0 : index
    %24 = vector.load %arg2[%c0_17, %c0_18] : memref<8x128xbf16, #tpu.memory_space<vmem>>, vector<8x128xbf16>
    %c0_19 = arith.constant 0 : index
    %c0_20 = arith.constant 0 : index
    %25 = vector.load %arg9[%c0_19, %c0_20] : memref<128x64xbf16, #tpu.memory_space<vmem>>, vector<128x64xbf16>
    %cst_21 = arith.constant dense<0.000000e+00> : vector<8x64xf32>
    %26 = tpu.matmul %24, %25, %cst_21 {dimension_numbers = #tpu.dot_dimension_numbers<[1], [0], [0], [1], [0, 0, 1, 1], [], []>} : vector<8x128xbf16>, vector<128x64xbf16>, vector<8x64xf32> -> vector<8x64xf32>
    %c0_22 = arith.constant 0 : index
    %c0_23 = arith.constant 0 : index
    %27 = vector.load %arg10[%c0_22, %c0_23] : memref<1x64xf32, #tpu.memory_space<vmem>>, vector<1x64xf32>
    %28 = vector.broadcast %27 : vector<1x64xf32> to vector<8x64xf32>
    %29 = arith.addf %26, %28 : vector<8x64xf32>
    %cst_24 = arith.constant 0.000000e+00 : f32
    %30 = vector.broadcast %cst_24 : f32 to vector<8x64xf32>
    %31 = arith.maximumf %29, %30 : vector<8x64xf32>
    %32 = arith.truncf %31 : vector<8x64xf32> to vector<8x64xbf16>
    %c0_25 = arith.constant 0 : index
    %c0_26 = arith.constant 0 : index
    %33 = vector.load %arg11[%c0_25, %c0_26] : memref<64x32xbf16, #tpu.memory_space<vmem>>, vector<64x32xbf16>
    %cst_27 = arith.constant dense<0.000000e+00> : vector<8x32xf32>
    %34 = tpu.matmul %32, %33, %cst_27 {dimension_numbers = #tpu.dot_dimension_numbers<[1], [0], [0], [1], [0, 0, 1, 1], [], []>} : vector<8x64xbf16>, vector<64x32xbf16>, vector<8x32xf32> -> vector<8x32xf32>
    %c0_28 = arith.constant 0 : index
    %c0_29 = arith.constant 0 : index
    %35 = vector.load %arg12[%c0_28, %c0_29] : memref<1x32xf32, #tpu.memory_space<vmem>>, vector<1x32xf32>
    %36 = vector.broadcast %35 : vector<1x32xf32> to vector<8x32xf32>
    %37 = arith.addf %34, %36 : vector<8x32xf32>
    %cst_30 = arith.constant 0.000000e+00 : f32
    %38 = vector.broadcast %cst_30 : f32 to vector<8x32xf32>
    %39 = arith.maximumf %37, %38 : vector<8x32xf32>
    %40 = arith.truncf %39 : vector<8x32xf32> to vector<8x32xbf16>
    %c0_31 = arith.constant 0 : index
    %c0_32 = arith.constant 0 : index
    %41 = vector.load %arg13[%c0_31, %c0_32] : memref<32x32xbf16, #tpu.memory_space<vmem>>, vector<32x32xbf16>
    %cst_33 = arith.constant dense<0.000000e+00> : vector<8x32xf32>
    %42 = tpu.matmul %40, %41, %cst_33 {dimension_numbers = #tpu.dot_dimension_numbers<[1], [0], [0], [1], [0, 0, 1, 1], [], []>} : vector<8x32xbf16>, vector<32x32xbf16>, vector<8x32xf32> -> vector<8x32xf32>
    %c0_34 = arith.constant 0 : index
    %c0_35 = arith.constant 0 : index
    %43 = vector.load %arg14[%c0_34, %c0_35] : memref<1x32xf32, #tpu.memory_space<vmem>>, vector<1x32xf32>
    %44 = vector.broadcast %43 : vector<1x32xf32> to vector<8x32xf32>
    %45 = arith.addf %42, %44 : vector<8x32xf32>
    %46 = arith.truncf %22 : vector<8x32xf32> to vector<8x32xbf16>
    %c0_36 = arith.constant 0 : index
    %c0_37 = arith.constant 0 : index
    %47 = vector.load %arg15[%c0_36, %c0_37] : memref<32x1024xbf16, #tpu.memory_space<vmem>>, vector<32x1024xbf16>
    %cst_38 = arith.constant dense<0.000000e+00> : vector<8x1024xf32>
    %48 = tpu.matmul %46, %47, %cst_38 {dimension_numbers = #tpu.dot_dimension_numbers<[1], [0], [0], [1], [0, 0, 1, 1], [], []>} : vector<8x32xbf16>, vector<32x1024xbf16>, vector<8x1024xf32> -> vector<8x1024xf32>
    %49 = arith.truncf %23 : vector<8x32xf32> to vector<8x32xbf16>
    %c0_39 = arith.constant 0 : index
    %c0_40 = arith.constant 0 : index
    %50 = vector.load %arg16[%c0_39, %c0_40] : memref<32x1024xbf16, #tpu.memory_space<vmem>>, vector<32x1024xbf16>
    %cst_41 = arith.constant dense<0.000000e+00> : vector<8x1024xf32>
    %51 = tpu.matmul %49, %50, %cst_41 {dimension_numbers = #tpu.dot_dimension_numbers<[1], [0], [0], [1], [0, 0, 1, 1], [], []>} : vector<8x32xbf16>, vector<32x1024xbf16>, vector<8x1024xf32> -> vector<8x1024xf32>
    %52 = arith.mulf %48, %51 : vector<8x1024xf32>
    %c0_42 = arith.constant 0 : index
    %c0_43 = arith.constant 0 : index
    %53 = vector.load %arg17[%c0_42, %c0_43] : memref<1024x32xf32, #tpu.memory_space<vmem>>, vector<1024x32xf32>
    %cst_44 = arith.constant dense<0.000000e+00> : vector<8x32xf32>
    %54 = tpu.matmul %52, %53, %cst_44 {dimension_numbers = #tpu.dot_dimension_numbers<[1], [0], [0], [1], [0, 0, 1, 1], [], []>} : vector<8x1024xf32>, vector<1024x32xf32>, vector<8x32xf32> -> vector<8x32xf32>
    %c0_45 = arith.constant 0 : index
    %c0_46 = arith.constant 0 : index
    %55 = vector.load %arg18[%c0_45, %c0_46] : memref<1x32xf32, #tpu.memory_space<vmem>>, vector<1x32xf32>
    %56 = vector.broadcast %55 : vector<1x32xf32> to vector<8x32xf32>
    %57 = arith.addf %54, %56 : vector<8x32xf32>
    %58 = arith.truncf %57 : vector<8x32xf32> to vector<8x32xbf16>
    %c0_47 = arith.constant 0 : index
    %c0_48 = arith.constant 0 : index
    %59 = vector.load %arg19[%c0_47, %c0_48] : memref<32x32xbf16, #tpu.memory_space<vmem>>, vector<32x32xbf16>
    %cst_49 = arith.constant dense<0.000000e+00> : vector<8x32xf32>
    %60 = tpu.matmul %58, %59, %cst_49 {dimension_numbers = #tpu.dot_dimension_numbers<[1], [0], [0], [1], [0, 0, 1, 1], [], []>} : vector<8x32xbf16>, vector<32x32xbf16>, vector<8x32xf32> -> vector<8x32xf32>
    %61 = arith.truncf %45 : vector<8x32xf32> to vector<8x32xbf16>
    %c0_50 = arith.constant 0 : index
    %c0_51 = arith.constant 0 : index
    %62 = vector.load %arg20[%c0_50, %c0_51] : memref<32x32xbf16, #tpu.memory_space<vmem>>, vector<32x32xbf16>
    %cst_52 = arith.constant dense<0.000000e+00> : vector<8x32xf32>
    %63 = tpu.matmul %61, %62, %cst_52 {dimension_numbers = #tpu.dot_dimension_numbers<[1], [0], [0], [1], [0, 0, 1, 1], [], []>} : vector<8x32xbf16>, vector<32x32xbf16>, vector<8x32xf32> -> vector<8x32xf32>
    %64 = arith.addf %60, %63 : vector<8x32xf32>
    %c0_53 = arith.constant 0 : index
    %c0_54 = arith.constant 0 : index
    %65 = vector.load %arg21[%c0_53, %c0_54] : memref<1x32xf32, #tpu.memory_space<vmem>>, vector<1x32xf32>
    %66 = vector.broadcast %65 : vector<1x32xf32> to vector<8x32xf32>
    %67 = arith.addf %64, %66 : vector<8x32xf32>
    %cst_55 = arith.constant 0.000000e+00 : f32
    %68 = vector.broadcast %cst_55 : f32 to vector<8x32xf32>
    %69 = arith.maximumf %67, %68 : vector<8x32xf32>
    %70 = arith.truncf %69 : vector<8x32xf32> to vector<8x32xbf16>
    %c0_56 = arith.constant 0 : index
    %c0_57 = arith.constant 0 : index
    %71 = vector.load %arg22[%c0_56, %c0_57] : memref<32x64xbf16, #tpu.memory_space<vmem>>, vector<32x64xbf16>
    %cst_58 = arith.constant dense<0.000000e+00> : vector<8x64xf32>
    %72 = tpu.matmul %70, %71, %cst_58 {dimension_numbers = #tpu.dot_dimension_numbers<[1], [0], [0], [1], [0, 0, 1, 1], [], []>} : vector<8x32xbf16>, vector<32x64xbf16>, vector<8x64xf32> -> vector<8x64xf32>
    %c0_59 = arith.constant 0 : index
    %c0_60 = arith.constant 0 : index
    %73 = vector.load %arg23[%c0_59, %c0_60] : memref<1x64xf32, #tpu.memory_space<vmem>>, vector<1x64xf32>
    %74 = vector.broadcast %73 : vector<1x64xf32> to vector<8x64xf32>
    %75 = arith.addf %72, %74 : vector<8x64xf32>
    %cst_61 = arith.constant 0.000000e+00 : f32
    %76 = vector.broadcast %cst_61 : f32 to vector<8x64xf32>
    %77 = arith.maximumf %75, %76 : vector<8x64xf32>
    %c0_62 = arith.constant 0 : index
    %c0_63 = arith.constant 0 : index
    %78 = vector.load %arg24[%c0_62, %c0_63] : memref<1x64xbf16, #tpu.memory_space<vmem>>, vector<1x64xbf16>
    %79 = arith.truncf %77 : vector<8x64xf32> to vector<8x64xbf16>
    %cst_64 = arith.constant dense<0.000000e+00> : vector<1x8xf32>
    %80 = tpu.matmul %78, %79, %cst_64 {dimension_numbers = #tpu.dot_dimension_numbers<[1], [1], [0], [0], [0, 0, 1, 0], [], []>} : vector<1x64xbf16>, vector<8x64xbf16>, vector<1x8xf32> -> vector<1x8xf32>
    %c0_65 = arith.constant 0 : index
    %c0_66 = arith.constant 0 : index
    %81 = vector.load %arg25[%c0_65, %c0_66] : memref<1x1xf32, #tpu.memory_space<vmem>>, vector<1x1xf32>
    %82 = vector.broadcast %81 : vector<1x1xf32> to vector<1x8xf32>
    %83 = arith.addf %80, %82 : vector<1x8xf32>
    %84 = arith.negf %83 : vector<1x8xf32>
    %85 = math.exp %84 : vector<1x8xf32>
    %cst_67 = arith.constant 1.000000e+00 : f32
    %86 = vector.broadcast %cst_67 : f32 to vector<1x8xf32>
    %87 = arith.addf %86, %85 : vector<1x8xf32>
    %88 = arith.divf %86, %87 : vector<1x8xf32>
    %c0_68 = arith.constant 0 : index
    %c0_69 = arith.constant 0 : index
    %89 = vector.load %arg26[%c0_68, %c0_69] : memref<1x8xf32, #tpu.memory_space<vmem>>, vector<1x8xf32>
    tpu.vector_store %arg26[%c0_68, %c0_69], %88 {strides = array<i32>} : memref<1x8xf32, #tpu.memory_space<vmem>>, vector<1x8xf32>,
    return
  }
  func.func @transform_0(%arg0: i32) -> (i32, i32) {
    %c0_i32 = arith.constant 0 : i32
    %c0_i32_0 = arith.constant 0 : i32
    return %arg0, %c0_i32 : i32, i32
  }
  func.func @transform_1(%arg0: i32) -> (i32, i32) {
    %c0_i32 = arith.constant 0 : i32
    %c0_i32_0 = arith.constant 0 : i32
    return %arg0, %c0_i32 : i32, i32
  }
  func.func @transform_2(%arg0: i32) -> (i32, i32) {
    %c0_i32 = arith.constant 0 : i32
    %c0_i32_0 = arith.constant 0 : i32
    %c0_i32_1 = arith.constant 0 : i32
    return %c0_i32, %c0_i32_0 : i32, i32
  }
  func.func @transform_3(%arg0: i32) -> (i32, i32) {
    %c0_i32 = arith.constant 0 : i32
    %c0_i32_0 = arith.constant 0 : i32
    %c0_i32_1 = arith.constant 0 : i32
    return %c0_i32, %c0_i32_0 : i32, i32
  }
  func.func @transform_4(%arg0: i32) -> (i32, i32) {
    %c0_i32 = arith.constant 0 : i32
    %c0_i32_0 = arith.constant 0 : i32
    %c0_i32_1 = arith.constant 0 : i32
    return %c0_i32, %c0_i32_0 : i32, i32
  }
  func.func @transform_5(%arg0: i32) -> (i32, i32) {
    %c0_i32 = arith.constant 0 : i32
    %c0_i32_0 = arith.constant 0 : i32
    %c0_i32_1 = arith.constant 0 : i32
    return %c0_i32, %c0_i32_0 : i32, i32
  }
  func.func @transform_6(%arg0: i32) -> (i32, i32) {
    %c0_i32 = arith.constant 0 : i32
    %c0_i32_0 = arith.constant 0 : i32
    %c0_i32_1 = arith.constant 0 : i32
    return %c0_i32, %c0_i32_0 : i32, i32
  }
  func.func @transform_7(%arg0: i32) -> (i32, i32) {
    %c0_i32 = arith.constant 0 : i32
    %c0_i32_0 = arith.constant 0 : i32
    %c0_i32_1 = arith.constant 0 : i32
    return %c0_i32, %c0_i32_0 : i32, i32
  }
  func.func @transform_8(%arg0: i32) -> (i32, i32) {
    %c0_i32 = arith.constant 0 : i32
    %c0_i32_0 = arith.constant 0 : i32
    %c0_i32_1 = arith.constant 0 : i32
    return %c0_i32, %c0_i32_0 : i32, i32
  }
  func.func @transform_9(%arg0: i32) -> (i32, i32) {
    %c0_i32 = arith.constant 0 : i32
    %c0_i32_0 = arith.constant 0 : i32
    %c0_i32_1 = arith.constant 0 : i32
    return %c0_i32, %c0_i32_0 : i32, i32
  }
  func.func @transform_10(%arg0: i32) -> (i32, i32) {
    %c0_i32 = arith.constant 0 : i32
    %c0_i32_0 = arith.constant 0 : i32
    %c0_i32_1 = arith.constant 0 : i32
    return %c0_i32, %c0_i32_0 : i32, i32
  }
  func.func @transform_11(%arg0: i32) -> (i32, i32) {
    %c0_i32 = arith.constant 0 : i32
    %c0_i32_0 = arith.constant 0 : i32
    %c0_i32_1 = arith.constant 0 : i32
    return %c0_i32, %c0_i32_0 : i32, i32
  }
  func.func @transform_12(%arg0: i32) -> (i32, i32) {
    %c0_i32 = arith.constant 0 : i32
    %c0_i32_0 = arith.constant 0 : i32
    %c0_i32_1 = arith.constant 0 : i32
    return %c0_i32, %c0_i32_0 : i32, i32
  }
  func.func @transform_13(%arg0: i32) -> (i32, i32) {
    %c0_i32 = arith.constant 0 : i32
    %c0_i32_0 = arith.constant 0 : i32
    %c0_i32_1 = arith.constant 0 : i32
    return %c0_i32, %c0_i32_0 : i32, i32
  }
  func.func @transform_14(%arg0: i32) -> (i32, i32) {
    %c0_i32 = arith.constant 0 : i32
    %c0_i32_0 = arith.constant 0 : i32
    %c0_i32_1 = arith.constant 0 : i32
    return %c0_i32, %c0_i32_0 : i32, i32
  }
  func.func @transform_15(%arg0: i32) -> (i32, i32) {
    %c0_i32 = arith.constant 0 : i32
    %c0_i32_0 = arith.constant 0 : i32
    %c0_i32_1 = arith.constant 0 : i32
    return %c0_i32, %c0_i32_0 : i32, i32
  }
  func.func @transform_16(%arg0: i32) -> (i32, i32) {
    %c0_i32 = arith.constant 0 : i32
    %c0_i32_0 = arith.constant 0 : i32
    %c0_i32_1 = arith.constant 0 : i32
    return %c0_i32, %c0_i32_0 : i32, i32
  }
  func.func @transform_17(%arg0: i32) -> (i32, i32) {
    %c0_i32 = arith.constant 0 : i32
    %c0_i32_0 = arith.constant 0 : i32
    %c0_i32_1 = arith.constant 0 : i32
    return %c0_i32, %c0_i32_0 : i32, i32
  }
  func.func @transform_18(%arg0: i32) -> (i32, i32) {
    %c0_i32 = arith.constant 0 : i32
    %c0_i32_0 = arith.constant 0 : i32
    %c0_i32_1 = arith.constant 0 : i32
    return %c0_i32, %c0_i32_0 : i32, i32
  }
  func.func @transform_19(%arg0: i32) -> (i32, i32) {
    %c0_i32 = arith.constant 0 : i32
    %c0_i32_0 = arith.constant 0 : i32
    %c0_i32_1 = arith.constant 0 : i32
    return %c0_i32, %c0_i32_0 : i32, i32
  }
  func.func @transform_20(%arg0: i32) -> (i32, i32) {
    %c0_i32 = arith.constant 0 : i32
    %c0_i32_0 = arith.constant 0 : i32
    %c0_i32_1 = arith.constant 0 : i32
    return %c0_i32, %c0_i32_0 : i32, i32
  }
  func.func @transform_21(%arg0: i32) -> (i32, i32) {
    %c0_i32 = arith.constant 0 : i32
    %c0_i32_0 = arith.constant 0 : i32
    %c0_i32_1 = arith.constant 0 : i32
    return %c0_i32, %c0_i32_0 : i32, i32
  }
  func.func @transform_22(%arg0: i32) -> (i32, i32) {
    %c0_i32 = arith.constant 0 : i32
    %c0_i32_0 = arith.constant 0 : i32
    %c0_i32_1 = arith.constant 0 : i32
    return %c0_i32, %c0_i32_0 : i32, i32
  }
  func.func @transform_23(%arg0: i32) -> (i32, i32) {
    %c0_i32 = arith.constant 0 : i32
    %c0_i32_0 = arith.constant 0 : i32
    %c0_i32_1 = arith.constant 0 : i32
    return %c0_i32, %c0_i32_0 : i32, i32
  }
  func.func @transform_24(%arg0: i32) -> (i32, i32) {
    %c0_i32 = arith.constant 0 : i32
    %c0_i32_0 = arith.constant 0 : i32
    %c0_i32_1 = arith.constant 0 : i32
    return %c0_i32, %c0_i32_0 : i32, i32
  }
  func.func @transform_25(%arg0: i32) -> (i32, i32) {
    %c0_i32 = arith.constant 0 : i32
    %c0_i32_0 = arith.constant 0 : i32
    return %c0_i32, %arg0 : i32, i32
  }
}

</mosaic_0001>

<llo_original>
// kernel: tpu_custom_call.1
$region0: #{tpu_custom_call.1}
  #allocation0 [shape = 'u32[]', space=smem, size = 0x4, offset = 0x4, fixed_abs, tag = 'smem constant byte address 0x4 - core index']
  #allocation1 [shape = 'u32[144,128]{1,0:T(1,128)}', space=vmem, size = 0x12000, scoped, tag = 'internal scratch']
  #allocation2 [shape = 'f32[1,1]{1,0:T(1,128)S(1)}', space=vmem, size = 0x200, scoped, tag = 'scoped memory for tpu_custom_call.1']
  %s0 = inlined_call_operand.vmem [shape: bf16[16,64], index: 0, kind: input, shape index: {}]
  %s1 = inlined_call_operand.vmem [shape: bf16[8,128], index: 1, kind: input, shape index: {}]
  %s2 = inlined_call_operand.vmem [shape: bf16[64,64], index: 2, kind: input, shape index: {}]
  %s3 = inlined_call_operand.vmem [shape: f32[1,64], index: 3, kind: input, shape index: {}]
  %s4 = inlined_call_operand.vmem [shape: bf16[64,32], index: 4, kind: input, shape index: {}]
  %s5 = inlined_call_operand.vmem [shape: f32[1,32], index: 5, kind: input, shape index: {}]
  %s6 = inlined_call_operand.vmem [shape: bf16[32,32], index: 6, kind: input, shape index: {}]
  %s7 = inlined_call_operand.vmem [shape: f32[1,32], index: 7, kind: input, shape index: {}]
  %s8 = inlined_call_operand.vmem [shape: bf16[128,64], index: 8, kind: input, shape index: {}]
  %s9 = inlined_call_operand.vmem [shape: f32[1,64], index: 9, kind: input, shape index: {}]
  %s10 = inlined_call_operand.vmem [shape: bf16[64,32], index: 10, kind: input, shape index: {}]
  %s11 = inlined_call_operand.vmem [shape: f32[1,32], index: 11, kind: input, shape index: {}]
  %s12 = inlined_call_operand.vmem [shape: bf16[32,32], index: 12, kind: input, shape index: {}]
  %s13 = inlined_call_operand.vmem [shape: f32[1,32], index: 13, kind: input, shape index: {}]
  %s14 = inlined_call_operand.vmem [shape: bf16[32,1024], index: 14, kind: input, shape index: {}]
  %s15 = inlined_call_operand.vmem [shape: bf16[32,1024], index: 15, kind: input, shape index: {}]
  %s16 = inlined_call_operand.vmem [shape: f32[1024,32], index: 16, kind: input, shape index: {}]
  %s17 = inlined_call_operand.vmem [shape: f32[1,32], index: 17, kind: input, shape index: {}]
  %s18 = inlined_call_operand.vmem [shape: bf16[32,32], index: 18, kind: input, shape index: {}]
  %s19 = inlined_call_operand.vmem [shape: bf16[32,32], index: 19, kind: input, shape index: {}]
  %s20 = inlined_call_operand.vmem [shape: f32[1,32], index: 20, kind: input, shape index: {}]
  %s21 = inlined_call_operand.vmem [shape: bf16[32,64], index: 21, kind: input, shape index: {}]
  %s22 = inlined_call_operand.vmem [shape: f32[1,64], index: 22, kind: input, shape index: {}]
  %s23 = inlined_call_operand.vmem [shape: bf16[1,64], index: 23, kind: input, shape index: {}]
  %s24 = inlined_call_operand.<no memory space> [shape: f32[1,1], index: 24, kind: input, shape index: {}]
  %s25 = inlined_call_operand.hbm [shape: f32[1,8], index: 25, kind: output, shape index: {}]
  %s26 = sld [smem:[#allocation0]]
  $region110: #{tpu_custom_call.1} parent=0
    _
  %s28 = ssub.s32 1, %s26
  %s29 = scalar_select 0, %s28, %s26
  %v30 = vstv %s24
  %31 = vst [vmem:[#allocation2] sm:$0x1] %v30
  $region1: #{tpu_custom_call.1} parent=0
    #allocation3 [shape = 'u8[512]{0}', space=vmem, size = 0x400, scoped, tag = 'output window, operand 0, single buffered']
    #allocation4 [shape = 's32[1]{0}', space=sflag, size = 0x4, scoped, tag = 'scoped memory for tpu_custom_call.1']
    %32 = vsyncpa [#allocation4], 0
    // Predicated region
    $region2: #{tpu_custom_call.1} parent=1 // pred_check
      _
    $region3: #{tpu_custom_call.1} parent=1 // pred_check_branch
      %34 = sbr.rel (0) target = $region5
    $region4: #{tpu_custom_call.1} parent=1 // pred_region
      _
    $region5: #{tpu_custom_call.1} parent=1 // pred_fallthru
      _
    // Predicated region
    $region6: #{tpu_custom_call.1} parent=1 // pred_check
      _
    $region7: #{tpu_custom_call.1} parent=1 // pred_check_branch
      %36 = sbr.rel (0) target = $region9
    $region8: #{tpu_custom_call.1} parent=1 // pred_region
      _
    $region9: #{tpu_custom_call.1} parent=1 // pred_fallthru
      _
    // Predicated region
    $region10: #{tpu_custom_call.1} parent=1 // pred_check
      _
    $region11: #{tpu_custom_call.1} parent=1 // pred_check_branch
      %38 = sbr.rel (0) target = $region13
    $region12: #{tpu_custom_call.1} parent=1 // pred_region
      _
    $region13: #{tpu_custom_call.1} parent=1 // pred_fallthru
      _
    // Predicated region
    $region14: #{tpu_custom_call.1} parent=1 // pred_check
      _
    $region15: #{tpu_custom_call.1} parent=1 // pred_check_branch
      %40 = sbr.rel (0) target = $region17
    $region16: #{tpu_custom_call.1} parent=1 // pred_region
      _
    $region17: #{tpu_custom_call.1} parent=1 // pred_fallthru
      _
    // Predicated region
    $region18: #{tpu_custom_call.1} parent=1 // pred_check
      _
    $region19: #{tpu_custom_call.1} parent=1 // pred_check_branch
      %42 = sbr.rel (0) target = $region21
    $region20: #{tpu_custom_call.1} parent=1 // pred_region
      _
    $region21: #{tpu_custom_call.1} parent=1 // pred_fallthru
      _
    // Predicated region
    $region22: #{tpu_custom_call.1} parent=1 // pred_check
      _
    $region23: #{tpu_custom_call.1} parent=1 // pred_check_branch
      %44 = sbr.rel (0) target = $region25
    $region24: #{tpu_custom_call.1} parent=1 // pred_region
      _
    $region25: #{tpu_custom_call.1} parent=1 // pred_fallthru
      _
    // Predicated region
    $region26: #{tpu_custom_call.1} parent=1 // pred_check
      _
    $region27: #{tpu_custom_call.1} parent=1 // pred_check_branch
      %46 = sbr.rel (0) target = $region29
    $region28: #{tpu_custom_call.1} parent=1 // pred_region
      _
    $region29: #{tpu_custom_call.1} parent=1 // pred_fallthru
      _
    // Predicated region
    $region30: #{tpu_custom_call.1} parent=1 // pred_check
      _
    $region31: #{tpu_custom_call.1} parent=1 // pred_check_branch
      %48 = sbr.rel (0) target = $region33
    $region32: #{tpu_custom_call.1} parent=1 // pred_region
      _
    $region33: #{tpu_custom_call.1} parent=1 // pred_fallthru
      _
    // Predicated region
    $region34: #{tpu_custom_call.1} parent=1 // pred_check
      _
    $region35: #{tpu_custom_call.1} parent=1 // pred_check_branch
      %50 = sbr.rel (0) target = $region37
    $region36: #{tpu_custom_call.1} parent=1 // pred_region
      _
    $region37: #{tpu_custom_call.1} parent=1 // pred_fallthru
      _
    // Predicated region
    $region38: #{tpu_custom_call.1} parent=1 // pred_check
      _
    $region39: #{tpu_custom_call.1} parent=1 // pred_check_branch
      %52 = sbr.rel (0) target = $region41
    $region40: #{tpu_custom_call.1} parent=1 // pred_region
      _
    $region41: #{tpu_custom_call.1} parent=1 // pred_fallthru
      _
    // Predicated region
    $region42: #{tpu_custom_call.1} parent=1 // pred_check
      _
    $region43: #{tpu_custom_call.1} parent=1 // pred_check_branch
      %54 = sbr.rel (0) target = $region45
    $region44: #{tpu_custom_call.1} parent=1 // pred_region
      _
    $region45: #{tpu_custom_call.1} parent=1 // pred_fallthru
      _
    // Predicated region
    $region46: #{tpu_custom_call.1} parent=1 // pred_check
      _
    $region47: #{tpu_custom_call.1} parent=1 // pred_check_branch
      %56 = sbr.rel (0) target = $region49
    $region48: #{tpu_custom_call.1} parent=1 // pred_region
      _
    $region49: #{tpu_custom_call.1} parent=1 // pred_fallthru
      _
    // Predicated region
    $region50: #{tpu_custom_call.1} parent=1 // pred_check
      _
    $region51: #{tpu_custom_call.1} parent=1 // pred_check_branch
      %58 = sbr.rel (0) target = $region53
    $region52: #{tpu_custom_call.1} parent=1 // pred_region
      _
    $region53: #{tpu_custom_call.1} parent=1 // pred_fallthru
      _
    // Predicated region
    $region54: #{tpu_custom_call.1} parent=1 // pred_check
      _
    $region55: #{tpu_custom_call.1} parent=1 // pred_check_branch
      %60 = sbr.rel (0) target = $region57
    $region56: #{tpu_custom_call.1} parent=1 // pred_region
      _
    $region57: #{tpu_custom_call.1} parent=1 // pred_fallthru
      _
    // Predicated region
    $region58: #{tpu_custom_call.1} parent=1 // pred_check
      _
    $region59: #{tpu_custom_call.1} parent=1 // pred_check_branch
      %62 = sbr.rel (0) target = $region61
    $region60: #{tpu_custom_call.1} parent=1 // pred_region
      _
    $region61: #{tpu_custom_call.1} parent=1 // pred_fallthru
      _
    // Predicated region
    $region62: #{tpu_custom_call.1} parent=1 // pred_check
      _
    $region63: #{tpu_custom_call.1} parent=1 // pred_check_branch
      %64 = sbr.rel (0) target = $region65
    $region64: #{tpu_custom_call.1} parent=1 // pred_region
      _
    $region65: #{tpu_custom_call.1} parent=1 // pred_fallthru
      _
    // Predicated region
    $region66: #{tpu_custom_call.1} parent=1 // pred_check
      _
    $region67: #{tpu_custom_call.1} parent=1 // pred_check_branch
      %66 = sbr.rel (0) target = $region69
    $region68: #{tpu_custom_call.1} parent=1 // pred_region
      _
    $region69: #{tpu_custom_call.1} parent=1 // pred_fallthru
      _
    // Predicated region
    $region70: #{tpu_custom_call.1} parent=1 // pred_check
      _
    $region71: #{tpu_custom_call.1} parent=1 // pred_check_branch
      %68 = sbr.rel (0) target = $region73
    $region72: #{tpu_custom_call.1} parent=1 // pred_region
      _
    $region73: #{tpu_custom_call.1} parent=1 // pred_fallthru
      _
    // Predicated region
    $region74: #{tpu_custom_call.1} parent=1 // pred_check
      _
    $region75: #{tpu_custom_call.1} parent=1 // pred_check_branch
      %70 = sbr.rel (0) target = $region77
    $region76: #{tpu_custom_call.1} parent=1 // pred_region
      _
    $region77: #{tpu_custom_call.1} parent=1 // pred_fallthru
      _
    // Predicated region
    $region78: #{tpu_custom_call.1} parent=1 // pred_check
      _
    $region79: #{tpu_custom_call.1} parent=1 // pred_check_branch
      %72 = sbr.rel (0) target = $region81
    $region80: #{tpu_custom_call.1} parent=1 // pred_region
      _
    $region81: #{tpu_custom_call.1} parent=1 // pred_fallthru
      _
    // Predicated region
    $region82: #{tpu_custom_call.1} parent=1 // pred_check
      _
    $region83: #{tpu_custom_call.1} parent=1 // pred_check_branch
      %74 = sbr.rel (0) target = $region85
    $region84: #{tpu_custom_call.1} parent=1 // pred_region
      _
    $region85: #{tpu_custom_call.1} parent=1 // pred_fallthru
      _
    // Predicated region
    $region86: #{tpu_custom_call.1} parent=1 // pred_check
      _
    $region87: #{tpu_custom_call.1} parent=1 // pred_check_branch
      %76 = sbr.rel (0) target = $region89
    $region88: #{tpu_custom_call.1} parent=1 // pred_region
      _
    $region89: #{tpu_custom_call.1} parent=1 // pred_fallthru
      _
    // Predicated region
    $region90: #{tpu_custom_call.1} parent=1 // pred_check
      _
    $region91: #{tpu_custom_call.1} parent=1 // pred_check_branch
      %78 = sbr.rel (0) target = $region93
    $region92: #{tpu_custom_call.1} parent=1 // pred_region
      _
    $region93: #{tpu_custom_call.1} parent=1 // pred_fallthru
      _
    // Predicated region
    $region94: #{tpu_custom_call.1} parent=1 // pred_check
      _
    $region95: #{tpu_custom_call.1} parent=1 // pred_check_branch
      %80 = sbr.rel (0) target = $region97
    $region96: #{tpu_custom_call.1} parent=1 // pred_region
      _
    $region97: #{tpu_custom_call.1} parent=1 // pred_fallthru
      _
    // Predicated region
    $region98: #{tpu_custom_call.1} parent=1 // pred_check
      _
    $region99: #{tpu_custom_call.1} parent=1 // pred_check_branch
      %82 = sbr.rel (0) target = $region101
    $region100: #{tpu_custom_call.1} parent=1 // pred_region
      _
    $region101: #{tpu_custom_call.1} parent=1 // pred_fallthru
      _
    %v84 = vld [vmem:[%s0] sm:$0xf]
    %v85 = vld [vmem:[%s0 + $0x4] sm:$0xf]
    %v86 = vld [vmem:[%s2] sm:$0xf]
    %v87 = vld [vmem:[%s2 + $0x4] sm:$0xf]
    %v88 = vld [vmem:[%s2 + $0x8] sm:$0xf]
    %v89 = vld [vmem:[%s2 + $0xc] sm:$0xf]
    %v90 = vld [vmem:[%s2 + $0x10] sm:$0xf]
    %v91 = vld [vmem:[%s2 + $0x14] sm:$0xf]
    %v92 = vld [vmem:[%s2 + $0x18] sm:$0xf]
    %v93 = vld [vmem:[%s2 + $0x1c] sm:$0xf]
    %v94 = vld [vmem:[%s3] sm:$0x1]
    %v96 = vlaneseq
    %v97 = vshrl.u32 %v96, 7
    %v98 = vsub.s32 0, %v97
    %v99 = vrot.slane %v94, %v98
    %v103 = vunpack.c.l.b16 %v84
    %v104 = vunpack.c.l.b16 %v85
    %v105 = vpack.c.b16 %v104, %v103
    %v114 = vunpack.c.l.b16 %v86
    %v115 = vunpack.c.l.b16 %v87
    %v116 = vunpack.c.l.b16 %v88
    %v117 = vunpack.c.l.b16 %v89
    %v118 = vunpack.c.l.b16 %v90
    %v119 = vunpack.c.l.b16 %v91
    %v120 = vunpack.c.l.b16 %v92
    %v121 = vunpack.c.l.b16 %v93
    %v122 = vpack.c.b16 %v115, %v114
    %v123 = vpack.c.b16 %v117, %v116
    %v124 = vpack.c.b16 %v119, %v118
    %v125 = vpack.c.b16 %v121, %v120
    %vm130 = vcmask 523264
    %v132 = vsel %vm130, %v105, 0
    %134 = vmatprep.subr.bf16.mxu0 0
    %135 = vmatpush1.bf16.msra.mxu0 %v122
    %136 = vmatprep.subr.bf16.mxu0 0
    %137 = vmatpush1.bf16.msra.mxu0 %v123
    %138 = vmatprep.subr.bf16.mxu0 0
    %139 = vmatpush1.bf16.msra.mxu0 %v124
    %140 = vmatprep.subr.bf16.mxu0 0
    %141 = vmatpush1.bf16.msra.mxu0 %v125
    %142 = vmatprep.subr.bf16.mxu0 0
    %143 = vmatpush1.bf16.msra.mxu0 0
    %144 = vmatprep.subr.bf16.mxu0 0
    %145 = vmatpush1.bf16.msra.mxu0 0
    %146 = vmatprep.subr.bf16.mxu0 0
    %147 = vmatpush1.bf16.msra.mxu0 0
    %148 = vmatprep.subr.bf16.mxu0 0
    %149 = vmatpush1.bf16.msra.mxu0 0
    %150 = vmatprep.subr.bf16.mxu0 0
    %151 = vmatpush1.bf16.msra.mxu0 0
    %152 = vmatprep.subr.bf16.mxu0 0
    %153 = vmatpush1.bf16.msra.mxu0 0
    %154 = vmatprep.subr.bf16.mxu0 0
    %155 = vmatpush1.bf16.msra.mxu0 0
    %156 = vmatprep.subr.bf16.mxu0 0
    %157 = vmatpush1.bf16.msra.mxu0 0
    %158 = vmatprep.subr.bf16.mxu0 0
    %159 = vmatpush1.bf16.msra.mxu0 0
    %160 = vmatprep.subr.bf16.mxu0 0
    %161 = vmatpush1.bf16.msra.mxu0 0
    %162 = vmatprep.subr.bf16.mxu0 0
    %163 = vmatpush1.bf16.msra.mxu0 0
    %164 = vmatprep.subr.bf16.mxu0 0
    %165 = vmatpush1.bf16.msra.mxu0 0
    %166 = vmatprep.mubr.bf16.mxu0 0
    %167 = vmatmul.mubr.bf16.gmra.mrb[0].mxu0 %v132
    %v168 = vpop.f32.mrb[0].mxu0
    %v169 = vadd.f32 %v99, %v168
    %v170 = vpop.f32.mrb[0].mxu0
    %v171 = vpop.f32.mrb[0].mxu0
    %v172 = vadd.f32 %v99, %v171
    %v173 = vpop.f32.mrb[0].mxu0
    %174 = vdwg.mxu0
    %v175 = vmax.f32 %v169, 0.0
    %v176 = vmax.f32 %v172, 0.0
    %v177 = vpack.c.bf16 %v176, %v175
    %v178 = vld [vmem:[%s4] sm:$0xf]
    %v179 = vld [vmem:[%s4 + $0x4] sm:$0xf]
    %v180 = vld [vmem:[%s4 + $0x8] sm:$0xf]
    %v181 = vld [vmem:[%s4 + $0xc] sm:$0xf]
    %v182 = vld [vmem:[%s4 + $0x10] sm:$0xf]
    %v183 = vld [vmem:[%s4 + $0x14] sm:$0xf]
    %v184 = vld [vmem:[%s4 + $0x18] sm:$0xf]
    %v185 = vld [vmem:[%s4 + $0x1c] sm:$0xf]
    %v186 = vld [vmem:[%s5] sm:$0x1]
    %v188 = vlaneseq
    %v189 = vshrl.u32 %v188, 7
    %v190 = vsub.s32 0, %v189
    %v191 = vrot.slane %v186, %v190
    %v201 = vunpack.c.l.b16 %v178
    %v202 = vunpack.c.l.b16 %v179
    %v203 = vunpack.c.l.b16 %v180
    %v204 = vunpack.c.l.b16 %v181
    %v205 = vunpack.c.l.b16 %v182
    %v206 = vunpack.c.l.b16 %v183
    %v207 = vunpack.c.l.b16 %v184
    %v208 = vunpack.c.l.b16 %v185
    %v209 = vpack.c.b16 %v202, %v201
    %v210 = vpack.c.b16 %v204, %v203
    %v211 = vpack.c.b16 %v206, %v205
    %v212 = vpack.c.b16 %v208, %v207
    %v218 = vsel %vm130, %v177, 0
    %220 = vmatprep.subr.bf16.mxu0 0
    %221 = vmatpush1.bf16.msra.mxu0 %v209
    %222 = vmatprep.subr.bf16.mxu0 0
    %223 = vmatpush1.bf16.msra.mxu0 %v210
    %224 = vmatprep.subr.bf16.mxu0 0
    %225 = vmatpush1.bf16.msra.mxu0 %v211
    %226 = vmatprep.subr.bf16.mxu0 0
    %227 = vmatpush1.bf16.msra.mxu0 %v212
    %228 = vmatprep.subr.bf16.mxu0 0
    %229 = vmatpush1.bf16.msra.mxu0 0
    %230 = vmatprep.subr.bf16.mxu0 0
    %231 = vmatpush1.bf16.msra.mxu0 0
    %232 = vmatprep.subr.bf16.mxu0 0
    %233 = vmatpush1.bf16.msra.mxu0 0
    %234 = vmatprep.subr.bf16.mxu0 0
    %235 = vmatpush1.bf16.msra.mxu0 0
    %236 = vmatprep.subr.bf16.mxu0 0
    %237 = vmatpush1.bf16.msra.mxu0 0
    %238 = vmatprep.subr.bf16.mxu0 0
    %239 = vmatpush1.bf16.msra.mxu0 0
    %240 = vmatprep.subr.bf16.mxu0 0
    %241 = vmatpush1.bf16.msra.mxu0 0
    %242 = vmatprep.subr.bf16.mxu0 0
    %243 = vmatpush1.bf16.msra.mxu0 0
    %244 = vmatprep.subr.bf16.mxu0 0
    %245 = vmatpush1.bf16.msra.mxu0 0
    %246 = vmatprep.subr.bf16.mxu0 0
    %247 = vmatpush1.bf16.msra.mxu0 0
    %248 = vmatprep.subr.bf16.mxu0 0
    %249 = vmatpush1.bf16.msra.mxu0 0
    %250 = vmatprep.subr.bf16.mxu0 0
    %251 = vmatpush1.bf16.msra.mxu0 0
    %252 = vmatprep.mubr.bf16.mxu0 0
    %253 = vmatmul.mubr.bf16.gmra.mrb[0].mxu0 %v218
    %v254 = vpop.f32.mrb[0].mxu0
    %v255 = vadd.f32 %v191, %v254
    %v256 = vpop.f32.mrb[0].mxu0
    %v257 = vpop.f32.mrb[0].mxu0
    %v258 = vadd.f32 %v191, %v257
    %v259 = vpop.f32.mrb[0].mxu0
    %260 = vdwg.mxu0
    %v261 = vmax.f32 %v255, 0.0
    %v262 = vmax.f32 %v258, 0.0
    %v263 = vpack.c.bf16 %v262, %v261
    %v264 = vld [vmem:[%s6] sm:$0xf]
    %v265 = vld [vmem:[%s6 + $0x4] sm:$0xf]
    %v266 = vld [vmem:[%s6 + $0x8] sm:$0xf]
    %v267 = vld [vmem:[%s6 + $0xc] sm:$0xf]
    %v268 = vld [vmem:[%s7] sm:$0x1]
    %v270 = vlaneseq
    %v271 = vshrl.u32 %v270, 7
    %v272 = vsub.s32 0, %v271
    %v273 = vrot.slane %v268, %v272
    %v279 = vunpack.c.l.b16 %v264
    %v280 = vunpack.c.l.b16 %v265
    %v281 = vunpack.c.l.b16 %v266
    %v282 = vunpack.c.l.b16 %v267
    %v283 = vpack.c.b16 %v280, %v279
    %v284 = vpack.c.b16 %v282, %v281
    %vm287 = vcmask 261120
    %v289 = vsel %vm287, %v263, 0
    %291 = vmatprep.subr.bf16.mxu0 0
    %292 = vmatpush1.bf16.msra.mxu0 %v283
    %293 = vmatprep.subr.bf16.mxu0 0
    %294 = vmatpush1.bf16.msra.mxu0 %v284
    %295 = vmatprep.subr.bf16.mxu0 0
    %296 = vmatpush1.bf16.msra.mxu0 0
    %297 = vmatprep.subr.bf16.mxu0 0
    %298 = vmatpush1.bf16.msra.mxu0 0
    %299 = vmatprep.subr.bf16.mxu0 0
    %300 = vmatpush1.bf16.msra.mxu0 0
    %301 = vmatprep.subr.bf16.mxu0 0
    %302 = vmatpush1.bf16.msra.mxu0 0
    %303 = vmatprep.subr.bf16.mxu0 0
    %304 = vmatpush1.bf16.msra.mxu0 0
    %305 = vmatprep.subr.bf16.mxu0 0
    %306 = vmatpush1.bf16.msra.mxu0 0
    %307 = vmatprep.subr.bf16.mxu0 0
    %308 = vmatpush1.bf16.msra.mxu0 0
    %309 = vmatprep.subr.bf16.mxu0 0
    %310 = vmatpush1.bf16.msra.mxu0 0
    %311 = vmatprep.subr.bf16.mxu0 0
    %312 = vmatpush1.bf16.msra.mxu0 0
    %313 = vmatprep.subr.bf16.mxu0 0
    %314 = vmatpush1.bf16.msra.mxu0 0
    %315 = vmatprep.subr.bf16.mxu0 0
    %316 = vmatpush1.bf16.msra.mxu0 0
    %317 = vmatprep.subr.bf16.mxu0 0
    %318 = vmatpush1.bf16.msra.mxu0 0
    %319 = vmatprep.subr.bf16.mxu0 0
    %320 = vmatpush1.bf16.msra.mxu0 0
    %321 = vmatprep.subr.bf16.mxu0 0
    %322 = vmatpush1.bf16.msra.mxu0 0
    %323 = vmatprep.mubr.bf16.mxu0 0
    %324 = vmatmul.mubr.bf16.gmra.mrb[0].mxu0 %v289
    %v325 = vpop.f32.mrb[0].mxu0
    %v326 = vadd.f32 %v273, %v325
    %v327 = vpop.f32.mrb[0].mxu0
    %v328 = vpop.f32.mrb[0].mxu0
    %v329 = vadd.f32 %v273, %v328
    %v330 = vpop.f32.mrb[0].mxu0
    %331 = vdwg.mxu0
    %v332 = vld [vmem:[%s1] sm:$0xf]
    %v333 = vld [vmem:[%s8] sm:$0xf]
    %v334 = vld [vmem:[%s8 + $0x4] sm:$0xf]
    %v335 = vld [vmem:[%s8 + $0x8] sm:$0xf]
    %v336 = vld [vmem:[%s8 + $0xc] sm:$0xf]
    %v337 = vld [vmem:[%s8 + $0x10] sm:$0xf]
    %v338 = vld [vmem:[%s8 + $0x14] sm:$0xf]
    %v339 = vld [vmem:[%s8 + $0x18] sm:$0xf]
    %v340 = vld [vmem:[%s8 + $0x1c] sm:$0xf]
    %v341 = vld [vmem:[%s8 + $0x20] sm:$0xf]
    %v342 = vld [vmem:[%s8 + $0x24] sm:$0xf]
    %v343 = vld [vmem:[%s8 + $0x28] sm:$0xf]
    %v344 = vld [vmem:[%s8 + $0x2c] sm:$0xf]
    %v345 = vld [vmem:[%s8 + $0x30] sm:$0xf]
    %v346 = vld [vmem:[%s8 + $0x34] sm:$0xf]
    %v347 = vld [vmem:[%s8 + $0x38] sm:$0xf]
    %v348 = vld [vmem:[%s8 + $0x3c] sm:$0xf]
    %v349 = vld [vmem:[%s9] sm:$0x1]
    %v351 = vlaneseq
    %v352 = vshrl.u32 %v351, 7
    %v353 = vsub.s32 0, %v352
    %v354 = vrot.slane %v349, %v353
    %v372 = vunpack.c.l.b16 %v333
    %v373 = vunpack.c.l.b16 %v334
    %v374 = vunpack.c.l.b16 %v335
    %v375 = vunpack.c.l.b16 %v336
    %v376 = vunpack.c.l.b16 %v337
    %v377 = vunpack.c.l.b16 %v338
    %v378 = vunpack.c.l.b16 %v339
    %v379 = vunpack.c.l.b16 %v340
    %v380 = vunpack.c.l.b16 %v341
    %v381 = vunpack.c.l.b16 %v342
    %v382 = vunpack.c.l.b16 %v343
    %v383 = vunpack.c.l.b16 %v344
    %v384 = vunpack.c.l.b16 %v345
    %v385 = vunpack.c.l.b16 %v346
    %v386 = vunpack.c.l.b16 %v347
    %v387 = vunpack.c.l.b16 %v348
    %v388 = vpack.c.b16 %v373, %v372
    %v389 = vpack.c.b16 %v375, %v374
    %v390 = vpack.c.b16 %v377, %v376
    %v391 = vpack.c.b16 %v379, %v378
    %v392 = vpack.c.b16 %v381, %v380
    %v393 = vpack.c.b16 %v383, %v382
    %v394 = vpack.c.b16 %v385, %v384
    %v395 = vpack.c.b16 %v387, %v386
    %404 = vmatprep.subr.bf16.mxu0 0
    %405 = vmatpush1.bf16.msra.mxu0 %v388
    %406 = vmatprep.subr.bf16.mxu0 0
    %407 = vmatpush1.bf16.msra.mxu0 %v389
    %408 = vmatprep.subr.bf16.mxu0 0
    %409 = vmatpush1.bf16.msra.mxu0 %v390
    %410 = vmatprep.subr.bf16.mxu0 0
    %411 = vmatpush1.bf16.msra.mxu0 %v391
    %412 = vmatprep.subr.bf16.mxu0 0
    %413 = vmatpush1.bf16.msra.mxu0 %v392
    %414 = vmatprep.subr.bf16.mxu0 0
    %415 = vmatpush1.bf16.msra.mxu0 %v393
    %416 = vmatprep.subr.bf16.mxu0 0
    %417 = vmatpush1.bf16.msra.mxu0 %v394
    %418 = vmatprep.subr.bf16.mxu0 0
    %419 = vmatpush1.bf16.msra.mxu0 %v395
    %420 = vmatprep.subr.bf16.mxu0 0
    %421 = vmatpush1.bf16.msra.mxu0 0
    %422 = vmatprep.subr.bf16.mxu0 0
    %423 = vmatpush1.bf16.msra.mxu0 0
    %424 = vmatprep.subr.bf16.mxu0 0
    %425 = vmatpush1.bf16.msra.mxu0 0
    %426 = vmatprep.subr.bf16.mxu0 0
    %427 = vmatpush1.bf16.msra.mxu0 0
    %428 = vmatprep.subr.bf16.mxu0 0
    %429 = vmatpush1.bf16.msra.mxu0 0
    %430 = vmatprep.subr.bf16.mxu0 0
    %431 = vmatpush1.bf16.msra.mxu0 0
    %432 = vmatprep.subr.bf16.mxu0 0
    %433 = vmatpush1.bf16.msra.mxu0 0
    %434 = vmatprep.subr.bf16.mxu0 0
    %435 = vmatpush1.bf16.msra.mxu0 0
    %436 = vmatprep.mubr.bf16.mxu0 0
    %437 = vmatmul.mubr.bf16.gmra.mrb[0].mxu0 %v332
    %v438 = vpop.f32.mrb[0].mxu0
    %v439 = vadd.f32 %v354, %v438
    %v440 = vpop.f32.mrb[0].mxu0
    %v441 = vpop.f32.mrb[0].mxu0
    %v442 = vpop.f32.mrb[0].mxu0
    %443 = vdwg.mxu0
    %v444 = vmax.f32 %v439, 0.0
    %v445 = vpack.c.bf16 %v444, %v444
    %v446 = vld [vmem:[%s10] sm:$0xf]
    %v447 = vld [vmem:[%s10 + $0x4] sm:$0xf]
    %v448 = vld [vmem:[%s10 + $0x8] sm:$0xf]
    %v449 = vld [vmem:[%s10 + $0xc] sm:$0xf]
    %v450 = vld [vmem:[%s10 + $0x10] sm:$0xf]
    %v451 = vld [vmem:[%s10 + $0x14] sm:$0xf]
    %v452 = vld [vmem:[%s10 + $0x18] sm:$0xf]
    %v453 = vld [vmem:[%s10 + $0x1c] sm:$0xf]
    %v454 = vld [vmem:[%s11] sm:$0x1]
    %v456 = vlaneseq
    %v457 = vshrl.u32 %v456, 7
    %v458 = vsub.s32 0, %v457
    %v459 = vrot.slane %v454, %v458
    %v469 = vunpack.c.l.b16 %v446
    %v470 = vunpack.c.l.b16 %v447
    %v471 = vunpack.c.l.b16 %v448
    %v472 = vunpack.c.l.b16 %v449
    %v473 = vunpack.c.l.b16 %v450
    %v474 = vunpack.c.l.b16 %v451
    %v475 = vunpack.c.l.b16 %v452
    %v476 = vunpack.c.l.b16 %v453
    %v477 = vpack.c.b16 %v470, %v469
    %v478 = vpack.c.b16 %v472, %v471
    %v479 = vpack.c.b16 %v474, %v473
    %v480 = vpack.c.b16 %v476, %v475
    %v486 = vsel %vm130, %v445, 0
    %488 = vmatprep.subr.bf16.mxu0 0
    %489 = vmatpush1.bf16.msra.mxu0 %v477
    %490 = vmatprep.subr.bf16.mxu0 0
    %491 = vmatpush1.bf16.msra.mxu0 %v478
    %492 = vmatprep.subr.bf16.mxu0 0
    %493 = vmatpush1.bf16.msra.mxu0 %v479
    %494 = vmatprep.subr.bf16.mxu0 0
    %495 = vmatpush1.bf16.msra.mxu0 %v480
    %496 = vmatprep.subr.bf16.mxu0 0
    %497 = vmatpush1.bf16.msra.mxu0 0
    %498 = vmatprep.subr.bf16.mxu0 0
    %499 = vmatpush1.bf16.msra.mxu0 0
    %500 = vmatprep.subr.bf16.mxu0 0
    %501 = vmatpush1.bf16.msra.mxu0 0
    %502 = vmatprep.subr.bf16.mxu0 0
    %503 = vmatpush1.bf16.msra.mxu0 0
    %504 = vmatprep.subr.bf16.mxu0 0
    %505 = vmatpush1.bf16.msra.mxu0 0
    %506 = vmatprep.subr.bf16.mxu0 0
    %507 = vmatpush1.bf16.msra.mxu0 0
    %508 = vmatprep.subr.bf16.mxu0 0
    %509 = vmatpush1.bf16.msra.mxu0 0
    %510 = vmatprep.subr.bf16.mxu0 0
    %511 = vmatpush1.bf16.msra.mxu0 0
    %512 = vmatprep.subr.bf16.mxu0 0
    %513 = vmatpush1.bf16.msra.mxu0 0
    %514 = vmatprep.subr.bf16.mxu0 0
    %515 = vmatpush1.bf16.msra.mxu0 0
    %516 = vmatprep.subr.bf16.mxu0 0
    %517 = vmatpush1.bf16.msra.mxu0 0
    %518 = vmatprep.subr.bf16.mxu0 0
    %519 = vmatpush1.bf16.msra.mxu0 0
    %520 = vmatprep.mubr.bf16.mxu0 0
    %521 = vmatmul.mubr.bf16.gmra.mrb[0].mxu0 %v486
    %v522 = vpop.f32.mrb[0].mxu0
    %v523 = vadd.f32 %v459, %v522
    %v524 = vpop.f32.mrb[0].mxu0
    %v525 = vpop.f32.mrb[0].mxu0
    %v526 = vpop.f32.mrb[0].mxu0
    %527 = vdwg.mxu0
    %v528 = vmax.f32 %v523, 0.0
    %v529 = vpack.c.bf16 %v528, %v528
    %v530 = vld [vmem:[%s12] sm:$0xf]
    %v531 = vld [vmem:[%s12 + $0x4] sm:$0xf]
    %v532 = vld [vmem:[%s12 + $0x8] sm:$0xf]
    %v533 = vld [vmem:[%s12 + $0xc] sm:$0xf]
    %v534 = vld [vmem:[%s13] sm:$0x1]
    %v536 = vlaneseq
    %v537 = vshrl.u32 %v536, 7
    %v538 = vsub.s32 0, %v537
    %v539 = vrot.slane %v534, %v538
    %v545 = vunpack.c.l.b16 %v530
    %v546 = vunpack.c.l.b16 %v531
    %v547 = vunpack.c.l.b16 %v532
    %v548 = vunpack.c.l.b16 %v533
    %v549 = vpack.c.b16 %v546, %v545
    %v550 = vpack.c.b16 %v548, %v547
    %v554 = vsel %vm287, %v529, 0
    %556 = vmatprep.subr.bf16.mxu0 0
    %557 = vmatpush1.bf16.msra.mxu0 %v549
    %558 = vmatprep.subr.bf16.mxu0 0
    %559 = vmatpush1.bf16.msra.mxu0 %v550
    %560 = vmatprep.subr.bf16.mxu0 0
    %561 = vmatpush1.bf16.msra.mxu0 0
    %562 = vmatprep.subr.bf16.mxu0 0
    %563 = vmatpush1.bf16.msra.mxu0 0
    %564 = vmatprep.subr.bf16.mxu0 0
    %565 = vmatpush1.bf16.msra.mxu0 0
    %566 = vmatprep.subr.bf16.mxu0 0
    %567 = vmatpush1.bf16.msra.mxu0 0
    %568 = vmatprep.subr.bf16.mxu0 0
    %569 = vmatpush1.bf16.msra.mxu0 0
    %570 = vmatprep.subr.bf16.mxu0 0
    %571 = vmatpush1.bf16.msra.mxu0 0
    %572 = vmatprep.subr.bf16.mxu0 0
    %573 = vmatpush1.bf16.msra.mxu0 0
    %574 = vmatprep.subr.bf16.mxu0 0
    %575 = vmatpush1.bf16.msra.mxu0 0
    %576 = vmatprep.subr.bf16.mxu0 0
    %577 = vmatpush1.bf16.msra.mxu0 0
    %578 = vmatprep.subr.bf16.mxu0 0
    %579 = vmatpush1.bf16.msra.mxu0 0
    %580 = vmatprep.subr.bf16.mxu0 0
    %581 = vmatpush1.bf16.msra.mxu0 0
    %582 = vmatprep.subr.bf16.mxu0 0
    %583 = vmatpush1.bf16.msra.mxu0 0
    %584 = vmatprep.subr.bf16.mxu0 0
    %585 = vmatpush1.bf16.msra.mxu0 0
    %586 = vmatprep.subr.bf16.mxu0 0
    %587 = vmatpush1.bf16.msra.mxu0 0
    %588 = vmatprep.mubr.bf16.mxu0 0
    %589 = vmatmul.mubr.bf16.gmra.mrb[0].mxu0 %v554
    %v590 = vpop.f32.mrb[0].mxu0
    %v591 = vadd.f32 %v539, %v590
    %v592 = vpop.f32.mrb[0].mxu0
    %v593 = vpop.f32.mrb[0].mxu0
    %v594 = vpop.f32.mrb[0].mxu0
    %595 = vdwg.mxu0
    %v596 = vpack.c.bf16 %v326, %v326
    %v597 = vld [vmem:[%s14] sm:$0xff]
    %v598 = vld [vmem:[%s14 + $0x8] sm:$0xff]
    %v599 = vld [vmem:[%s14 + $0x10] sm:$0xff]
    %v600 = vld [vmem:[%s14 + $0x18] sm:$0xff]
    %v601 = vld [vmem:[%s14 + $0x20] sm:$0xff]
    %v602 = vld [vmem:[%s14 + $0x28] sm:$0xff]
    %v603 = vld [vmem:[%s14 + $0x30] sm:$0xff]
    %v604 = vld [vmem:[%s14 + $0x38] sm:$0xff]
    %v605 = vld [vmem:[%s14 + $0x40] sm:$0xff]
    %v606 = vld [vmem:[%s14 + $0x48] sm:$0xff]
    %v607 = vld [vmem:[%s14 + $0x50] sm:$0xff]
    %v608 = vld [vmem:[%s14 + $0x58] sm:$0xff]
    %v609 = vld [vmem:[%s14 + $0x60] sm:$0xff]
    %v610 = vld [vmem:[%s14 + $0x68] sm:$0xff]
    %v611 = vld [vmem:[%s14 + $0x70] sm:$0xff]
    %v612 = vld [vmem:[%s14 + $0x78] sm:$0xff]
    %v629 = vunpack.c.l.b16 %v597
    %v630 = vunpack.c.h.b16 %v597
    %v631 = vunpack.c.l.b16 %v598
    %v632 = vunpack.c.h.b16 %v598
    %v633 = vunpack.c.l.b16 %v599
    %v634 = vunpack.c.h.b16 %v599
    %v635 = vunpack.c.l.b16 %v600
    %v636 = vunpack.c.h.b16 %v600
    %v637 = vunpack.c.l.b16 %v601
    %v638 = vunpack.c.h.b16 %v601
    %v639 = vunpack.c.l.b16 %v602
    %v640 = vunpack.c.h.b16 %v602
    %v641 = vunpack.c.l.b16 %v603
    %v642 = vunpack.c.h.b16 %v603
    %v643 = vunpack.c.l.b16 %v604
    %v644 = vunpack.c.h.b16 %v604
    %v645 = vunpack.c.l.b16 %v605
    %v646 = vunpack.c.h.b16 %v605
    %v647 = vunpack.c.l.b16 %v606
    %v648 = vunpack.c.h.b16 %v606
    %v649 = vunpack.c.l.b16 %v607
    %v650 = vunpack.c.h.b16 %v607
    %v651 = vunpack.c.l.b16 %v608
    %v652 = vunpack.c.h.b16 %v608
    %v653 = vunpack.c.l.b16 %v609
    %v654 = vunpack.c.h.b16 %v609
    %v655 = vunpack.c.l.b16 %v610
    %v656 = vunpack.c.h.b16 %v610
    %v657 = vunpack.c.l.b16 %v611
    %v658 = vunpack.c.h.b16 %v611
    %v659 = vunpack.c.l.b16 %v612
    %v660 = vunpack.c.h.b16 %v612
    %v661 = vpack.c.b16 %v637, %v629
    %v662 = vpack.c.b16 %v638, %v630
    %v663 = vpack.c.b16 %v639, %v631
    %v664 = vpack.c.b16 %v640, %v632
    %v665 = vpack.c.b16 %v641, %v633
    %v666 = vpack.c.b16 %v642, %v634
    %v667 = vpack.c.b16 %v643, %v635
    %v668 = vpack.c.b16 %v644, %v636
    %v669 = vpack.c.b16 %v653, %v645
    %v670 = vpack.c.b16 %v654, %v646
    %v671 = vpack.c.b16 %v655, %v647
    %v672 = vpack.c.b16 %v656, %v648
    %v673 = vpack.c.b16 %v657, %v649
    %v674 = vpack.c.b16 %v658, %v650
    %v675 = vpack.c.b16 %v659, %v651
    %v676 = vpack.c.b16 %v660, %v652
    %v694 = vsel %vm287, %v596, 0
    %696 = vmatprep.subr.bf16.mxu0 %v662
    %697 = vmatpush1.bf16.msra.mxu0 %v661
    %698 = vmatprep.subr.bf16.mxu0 %v670
    %699 = vmatpush1.bf16.msra.mxu0 %v669
    %700 = vmatprep.subr.bf16.mxu0 0
    %701 = vmatpush1.bf16.msra.mxu0 0
    %702 = vmatprep.subr.bf16.mxu0 0
    %703 = vmatpush1.bf16.msra.mxu0 0
    %704 = vmatprep.subr.bf16.mxu0 0
    %705 = vmatpush1.bf16.msra.mxu0 0
    %706 = vmatprep.subr.bf16.mxu0 0
    %707 = vmatpush1.bf16.msra.mxu0 0
    %708 = vmatprep.subr.bf16.mxu0 0
    %709 = vmatpush1.bf16.msra.mxu0 0
    %710 = vmatprep.subr.bf16.mxu0 0
    %711 = vmatpush1.bf16.msra.mxu0 0
    %712 = vmatprep.subr.bf16.mxu0 0
    %713 = vmatpush1.bf16.msra.mxu0 0
    %714 = vmatprep.subr.bf16.mxu0 0
    %715 = vmatpush1.bf16.msra.mxu0 0
    %716 = vmatprep.subr.bf16.mxu0 0
    %717 = vmatpush1.bf16.msra.mxu0 0
    %718 = vmatprep.subr.bf16.mxu0 0
    %719 = vmatpush1.bf16.msra.mxu0 0
    %720 = vmatprep.subr.bf16.mxu0 0
    %721 = vmatpush1.bf16.msra.mxu0 0
    %722 = vmatprep.subr.bf16.mxu0 0
    %723 = vmatpush1.bf16.msra.mxu0 0
    %724 = vmatprep.subr.bf16.mxu0 0
    %725 = vmatpush1.bf16.msra.mxu0 0
    %726 = vmatprep.subr.bf16.mxu0 0
    %727 = vmatpush1.bf16.msra.mxu0 0
    %728 = vmatprep.mubr.bf16.mxu0 0
    %729 = vmatmul.mubr.bf16.gmra.mrb[0].mxu0 %v694
    %v730 = vpop.f32.mrb[0].mxu0
    %v731 = vadd.f32 0.0, %v730
    %v732 = vpop.f32.mrb[0].mxu0
    %v733 = vadd.f32 0.0, %v732
    %v734 = vpop.f32.mrb[0].mxu0
    %v735 = vpop.f32.mrb[0].mxu0
    %736 = vdwg.mxu0
    %737 = vmatprep.subr.bf16.mxu0 %v664
    %738 = vmatpush1.bf16.msra.mxu0 %v663
    %739 = vmatprep.subr.bf16.mxu0 %v672
    %740 = vmatpush1.bf16.msra.mxu0 %v671
    %741 = vmatprep.subr.bf16.mxu0 0
    %742 = vmatpush1.bf16.msra.mxu0 0
    %743 = vmatprep.subr.bf16.mxu0 0
    %744 = vmatpush1.bf16.msra.mxu0 0
    %745 = vmatprep.subr.bf16.mxu0 0
    %746 = vmatpush1.bf16.msra.mxu0 0
    %747 = vmatprep.subr.bf16.mxu0 0
    %748 = vmatpush1.bf16.msra.mxu0 0
    %749 = vmatprep.subr.bf16.mxu0 0
    %750 = vmatpush1.bf16.msra.mxu0 0
    %751 = vmatprep.subr.bf16.mxu0 0
    %752 = vmatpush1.bf16.msra.mxu0 0
    %753 = vmatprep.subr.bf16.mxu0 0
    %754 = vmatpush1.bf16.msra.mxu0 0
    %755 = vmatprep.subr.bf16.mxu0 0
    %756 = vmatpush1.bf16.msra.mxu0 0
    %757 = vmatprep.subr.bf16.mxu0 0
    %758 = vmatpush1.bf16.msra.mxu0 0
    %759 = vmatprep.subr.bf16.mxu0 0
    %760 = vmatpush1.bf16.msra.mxu0 0
    %761 = vmatprep.subr.bf16.mxu0 0
    %762 = vmatpush1.bf16.msra.mxu0 0
    %763 = vmatprep.subr.bf16.mxu0 0
    %764 = vmatpush1.bf16.msra.mxu0 0
    %765 = vmatprep.subr.bf16.mxu0 0
    %766 = vmatpush1.bf16.msra.mxu0 0
    %767 = vmatprep.subr.bf16.mxu0 0
    %768 = vmatpush1.bf16.msra.mxu0 0
    %769 = vmatprep.mubr.bf16.mxu0 0
    %770 = vmatmul.mubr.bf16.gmra.mrb[0].mxu0 %v694
    %v771 = vpop.f32.mrb[0].mxu0
    %v772 = vadd.f32 0.0, %v771
    %v773 = vpop.f32.mrb[0].mxu0
    %v774 = vadd.f32 0.0, %v773
    %v775 = vpop.f32.mrb[0].mxu0
    %v776 = vpop.f32.mrb[0].mxu0
    %777 = vdwg.mxu0
    %778 = vmatprep.subr.bf16.mxu0 %v666
    %779 = vmatpush1.bf16.msra.mxu0 %v665
    %780 = vmatprep.subr.bf16.mxu0 %v674
    %781 = vmatpush1.bf16.msra.mxu0 %v673
    %782 = vmatprep.subr.bf16.mxu0 0
    %783 = vmatpush1.bf16.msra.mxu0 0
    %784 = vmatprep.subr.bf16.mxu0 0
    %785 = vmatpush1.bf16.msra.mxu0 0
    %786 = vmatprep.subr.bf16.mxu0 0
    %787 = vmatpush1.bf16.msra.mxu0 0
    %788 = vmatprep.subr.bf16.mxu0 0
    %789 = vmatpush1.bf16.msra.mxu0 0
    %790 = vmatprep.subr.bf16.mxu0 0
    %791 = vmatpush1.bf16.msra.mxu0 0
    %792 = vmatprep.subr.bf16.mxu0 0
    %793 = vmatpush1.bf16.msra.mxu0 0
    %794 = vmatprep.subr.bf16.mxu0 0
    %795 = vmatpush1.bf16.msra.mxu0 0
    %796 = vmatprep.subr.bf16.mxu0 0
    %797 = vmatpush1.bf16.msra.mxu0 0
    %798 = vmatprep.subr.bf16.mxu0 0
    %799 = vmatpush1.bf16.msra.mxu0 0
    %800 = vmatprep.subr.bf16.mxu0 0
    %801 = vmatpush1.bf16.msra.mxu0 0
    %802 = vmatprep.subr.bf16.mxu0 0
    %803 = vmatpush1.bf16.msra.mxu0 0
    %804 = vmatprep.subr.bf16.mxu0 0
    %805 = vmatpush1.bf16.msra.mxu0 0
    %806 = vmatprep.subr.bf16.mxu0 0
    %807 = vmatpush1.bf16.msra.mxu0 0
    %808 = vmatprep.subr.bf16.mxu0 0
    %809 = vmatpush1.bf16.msra.mxu0 0
    %810 = vmatprep.mubr.bf16.mxu0 0
    %811 = vmatmul.mubr.bf16.gmra.mrb[0].mxu0 %v694
    %v812 = vpop.f32.mrb[0].mxu0
    %v813 = vadd.f32 0.0, %v812
    %v814 = vpop.f32.mrb[0].mxu0
    %v815 = vadd.f32 0.0, %v814
    %v816 = vpop.f32.mrb[0].mxu0
    %v817 = vpop.f32.mrb[0].mxu0
    %818 = vdwg.mxu0
    %819 = vmatprep.subr.bf16.mxu0 %v668
    %820 = vmatpush1.bf16.msra.mxu0 %v667
    %821 = vmatprep.subr.bf16.mxu0 %v676
    %822 = vmatpush1.bf16.msra.mxu0 %v675
    %823 = vmatprep.subr.bf16.mxu0 0
    %824 = vmatpush1.bf16.msra.mxu0 0
    %825 = vmatprep.subr.bf16.mxu0 0
    %826 = vmatpush1.bf16.msra.mxu0 0
    %827 = vmatprep.subr.bf16.mxu0 0
    %828 = vmatpush1.bf16.msra.mxu0 0
    %829 = vmatprep.subr.bf16.mxu0 0
    %830 = vmatpush1.bf16.msra.mxu0 0
    %831 = vmatprep.subr.bf16.mxu0 0
    %832 = vmatpush1.bf16.msra.mxu0 0
    %833 = vmatprep.subr.bf16.mxu0 0
    %834 = vmatpush1.bf16.msra.mxu0 0
    %835 = vmatprep.subr.bf16.mxu0 0
    %836 = vmatpush1.bf16.msra.mxu0 0
    %837 = vmatprep.subr.bf16.mxu0 0
    %838 = vmatpush1.bf16.msra.mxu0 0
    %839 = vmatprep.subr.bf16.mxu0 0
    %840 = vmatpush1.bf16.msra.mxu0 0
    %841 = vmatprep.subr.bf16.mxu0 0
    %842 = vmatpush1.bf16.msra.mxu0 0
    %843 = vmatprep.subr.bf16.mxu0 0
    %844 = vmatpush1.bf16.msra.mxu0 0
    %845 = vmatprep.subr.bf16.mxu0 0
    %846 = vmatpush1.bf16.msra.mxu0 0
    %847 = vmatprep.subr.bf16.mxu0 0
    %848 = vmatpush1.bf16.msra.mxu0 0
    %849 = vmatprep.subr.bf16.mxu0 0
    %850 = vmatpush1.bf16.msra.mxu0 0
    %851 = vmatprep.mubr.bf16.mxu0 0
    %852 = vmatmul.mubr.bf16.gmra.mrb[0].mxu0 %v694
    %v853 = vpop.f32.mrb[0].mxu0
    %v854 = vadd.f32 0.0, %v853
    %v855 = vpop.f32.mrb[0].mxu0
    %v856 = vadd.f32 0.0, %v855
    %v857 = vpop.f32.mrb[0].mxu0
    %v858 = vpop.f32.mrb[0].mxu0
    %859 = vdwg.mxu0
    %v860 = vpack.c.bf16 %v329, %v329
    %v861 = vld [vmem:[%s15] sm:$0xff]
    %v862 = vld [vmem:[%s15 + $0x8] sm:$0xff]
    %v863 = vld [vmem:[%s15 + $0x10] sm:$0xff]
    %v864 = vld [vmem:[%s15 + $0x18] sm:$0xff]
    %v865 = vld [vmem:[%s15 + $0x20] sm:$0xff]
    %v866 = vld [vmem:[%s15 + $0x28] sm:$0xff]
    %v867 = vld [vmem:[%s15 + $0x30] sm:$0xff]
    %v868 = vld [vmem:[%s15 + $0x38] sm:$0xff]
    %v869 = vld [vmem:[%s15 + $0x40] sm:$0xff]
    %v870 = vld [vmem:[%s15 + $0x48] sm:$0xff]
    %v871 = vld [vmem:[%s15 + $0x50] sm:$0xff]
    %v872 = vld [vmem:[%s15 + $0x58] sm:$0xff]
    %v873 = vld [vmem:[%s15 + $0x60] sm:$0xff]
    %v874 = vld [vmem:[%s15 + $0x68] sm:$0xff]
    %v875 = vld [vmem:[%s15 + $0x70] sm:$0xff]
    %v876 = vld [vmem:[%s15 + $0x78] sm:$0xff]
    %v893 = vunpack.c.l.b16 %v861
    %v894 = vunpack.c.h.b16 %v861
    %v895 = vunpack.c.l.b16 %v862
    %v896 = vunpack.c.h.b16 %v862
    %v897 = vunpack.c.l.b16 %v863
    %v898 = vunpack.c.h.b16 %v863
    %v899 = vunpack.c.l.b16 %v864
    %v900 = vunpack.c.h.b16 %v864
    %v901 = vunpack.c.l.b16 %v865
    %v902 = vunpack.c.h.b16 %v865
    %v903 = vunpack.c.l.b16 %v866
    %v904 = vunpack.c.h.b16 %v866
    %v905 = vunpack.c.l.b16 %v867
    %v906 = vunpack.c.h.b16 %v867
    %v907 = vunpack.c.l.b16 %v868
    %v908 = vunpack.c.h.b16 %v868
    %v909 = vunpack.c.l.b16 %v869
    %v910 = vunpack.c.h.b16 %v869
    %v911 = vunpack.c.l.b16 %v870
    %v912 = vunpack.c.h.b16 %v870
    %v913 = vunpack.c.l.b16 %v871
    %v914 = vunpack.c.h.b16 %v871
    %v915 = vunpack.c.l.b16 %v872
    %v916 = vunpack.c.h.b16 %v872
    %v917 = vunpack.c.l.b16 %v873
    %v918 = vunpack.c.h.b16 %v873
    %v919 = vunpack.c.l.b16 %v874
    %v920 = vunpack.c.h.b16 %v874
    %v921 = vunpack.c.l.b16 %v875
    %v922 = vunpack.c.h.b16 %v875
    %v923 = vunpack.c.l.b16 %v876
    %v924 = vunpack.c.h.b16 %v876
    %v925 = vpack.c.b16 %v901, %v893
    %v926 = vpack.c.b16 %v902, %v894
    %v927 = vpack.c.b16 %v903, %v895
    %v928 = vpack.c.b16 %v904, %v896
    %v929 = vpack.c.b16 %v905, %v897
    %v930 = vpack.c.b16 %v906, %v898
    %v931 = vpack.c.b16 %v907, %v899
    %v932 = vpack.c.b16 %v908, %v900
    %v933 = vpack.c.b16 %v917, %v909
    %v934 = vpack.c.b16 %v918, %v910
    %v935 = vpack.c.b16 %v919, %v911
    %v936 = vpack.c.b16 %v920, %v912
    %v937 = vpack.c.b16 %v921, %v913
    %v938 = vpack.c.b16 %v922, %v914
    %v939 = vpack.c.b16 %v923, %v915
    %v940 = vpack.c.b16 %v924, %v916
    %v958 = vsel %vm287, %v860, 0
    %960 = vmatprep.subr.bf16.mxu0 %v926
    %961 = vmatpush1.bf16.msra.mxu0 %v925
    %962 = vmatprep.subr.bf16.mxu0 %v934
    %963 = vmatpush1.bf16.msra.mxu0 %v933
    %964 = vmatprep.subr.bf16.mxu0 0
    %965 = vmatpush1.bf16.msra.mxu0 0
    %966 = vmatprep.subr.bf16.mxu0 0
    %967 = vmatpush1.bf16.msra.mxu0 0
    %968 = vmatprep.subr.bf16.mxu0 0
    %969 = vmatpush1.bf16.msra.mxu0 0
    %970 = vmatprep.subr.bf16.mxu0 0
    %971 = vmatpush1.bf16.msra.mxu0 0
    %972 = vmatprep.subr.bf16.mxu0 0
    %973 = vmatpush1.bf16.msra.mxu0 0
    %974 = vmatprep.subr.bf16.mxu0 0
    %975 = vmatpush1.bf16.msra.mxu0 0
    %976 = vmatprep.subr.bf16.mxu0 0
    %977 = vmatpush1.bf16.msra.mxu0 0
    %978 = vmatprep.subr.bf16.mxu0 0
    %979 = vmatpush1.bf16.msra.mxu0 0
    %980 = vmatprep.subr.bf16.mxu0 0
    %981 = vmatpush1.bf16.msra.mxu0 0
    %982 = vmatprep.subr.bf16.mxu0 0
    %983 = vmatpush1.bf16.msra.mxu0 0
    %984 = vmatprep.subr.bf16.mxu0 0
    %985 = vmatpush1.bf16.msra.mxu0 0
    %986 = vmatprep.subr.bf16.mxu0 0
    %987 = vmatpush1.bf16.msra.mxu0 0
    %988 = vmatprep.subr.bf16.mxu0 0
    %989 = vmatpush1.bf16.msra.mxu0 0
    %990 = vmatprep.subr.bf16.mxu0 0
    %991 = vmatpush1.bf16.msra.mxu0 0
    %992 = vmatprep.mubr.bf16.mxu0 0
    %993 = vmatmul.mubr.bf16.gmra.mrb[0].mxu0 %v958
    %v994 = vpop.f32.mrb[0].mxu0
    %v995 = vadd.f32 0.0, %v994
    %v996 = vpop.f32.mrb[0].mxu0
    %v997 = vadd.f32 0.0, %v996
    %v998 = vpop.f32.mrb[0].mxu0
    %v999 = vpop.f32.mrb[0].mxu0
    %1000 = vdwg.mxu0
    %1001 = vmatprep.subr.bf16.mxu0 %v928
    %1002 = vmatpush1.bf16.msra.mxu0 %v927
    %1003 = vmatprep.subr.bf16.mxu0 %v936
    %1004 = vmatpush1.bf16.msra.mxu0 %v935
    %1005 = vmatprep.subr.bf16.mxu0 0
    %1006 = vmatpush1.bf16.msra.mxu0 0
    %1007 = vmatprep.subr.bf16.mxu0 0
    %1008 = vmatpush1.bf16.msra.mxu0 0
    %1009 = vmatprep.subr.bf16.mxu0 0
    %1010 = vmatpush1.bf16.msra.mxu0 0
    %1011 = vmatprep.subr.bf16.mxu0 0
    %1012 = vmatpush1.bf16.msra.mxu0 0
    %1013 = vmatprep.subr.bf16.mxu0 0
    %1014 = vmatpush1.bf16.msra.mxu0 0
    %1015 = vmatprep.subr.bf16.mxu0 0
    %1016 = vmatpush1.bf16.msra.mxu0 0
    %1017 = vmatprep.subr.bf16.mxu0 0
    %1018 = vmatpush1.bf16.msra.mxu0 0
    %1019 = vmatprep.subr.bf16.mxu0 0
    %1020 = vmatpush1.bf16.msra.mxu0 0
    %1021 = vmatprep.subr.bf16.mxu0 0
    %1022 = vmatpush1.bf16.msra.mxu0 0
    %1023 = vmatprep.subr.bf16.mxu0 0
    %1024 = vmatpush1.bf16.msra.mxu0 0
    %1025 = vmatprep.subr.bf16.mxu0 0
    %1026 = vmatpush1.bf16.msra.mxu0 0
    %1027 = vmatprep.subr.bf16.mxu0 0
    %1028 = vmatpush1.bf16.msra.mxu0 0
    %1029 = vmatprep.subr.bf16.mxu0 0
    %1030 = vmatpush1.bf16.msra.mxu0 0
    %1031 = vmatprep.subr.bf16.mxu0 0
    %1032 = vmatpush1.bf16.msra.mxu0 0
    %1033 = vmatprep.mubr.bf16.mxu0 0
    %1034 = vmatmul.mubr.bf16.gmra.mrb[0].mxu0 %v958
    %v1035 = vpop.f32.mrb[0].mxu0
    %v1036 = vadd.f32 0.0, %v1035
    %v1037 = vpop.f32.mrb[0].mxu0
    %v1038 = vadd.f32 0.0, %v1037
    %v1039 = vpop.f32.mrb[0].mxu0
    %v1040 = vpop.f32.mrb[0].mxu0
    %1041 = vdwg.mxu0
    %1042 = vmatprep.subr.bf16.mxu0 %v930
    %1043 = vmatpush1.bf16.msra.mxu0 %v929
    %1044 = vmatprep.subr.bf16.mxu0 %v938
    %1045 = vmatpush1.bf16.msra.mxu0 %v937
    %1046 = vmatprep.subr.bf16.mxu0 0
    %1047 = vmatpush1.bf16.msra.mxu0 0
    %1048 = vmatprep.subr.bf16.mxu0 0
    %1049 = vmatpush1.bf16.msra.mxu0 0
    %1050 = vmatprep.subr.bf16.mxu0 0
    %1051 = vmatpush1.bf16.msra.mxu0 0
    %1052 = vmatprep.subr.bf16.mxu0 0
    %1053 = vmatpush1.bf16.msra.mxu0 0
    %1054 = vmatprep.subr.bf16.mxu0 0
    %1055 = vmatpush1.bf16.msra.mxu0 0
    %1056 = vmatprep.subr.bf16.mxu0 0
    %1057 = vmatpush1.bf16.msra.mxu0 0
    %1058 = vmatprep.subr.bf16.mxu0 0
    %1059 = vmatpush1.bf16.msra.mxu0 0
    %1060 = vmatprep.subr.bf16.mxu0 0
    %1061 = vmatpush1.bf16.msra.mxu0 0
    %1062 = vmatprep.subr.bf16.mxu0 0
    %1063 = vmatpush1.bf16.msra.mxu0 0
    %1064 = vmatprep.subr.bf16.mxu0 0
    %1065 = vmatpush1.bf16.msra.mxu0 0
    %1066 = vmatprep.subr.bf16.mxu0 0
    %1067 = vmatpush1.bf16.msra.mxu0 0
    %1068 = vmatprep.subr.bf16.mxu0 0
    %1069 = vmatpush1.bf16.msra.mxu0 0
    %1070 = vmatprep.subr.bf16.mxu0 0
    %1071 = vmatpush1.bf16.msra.mxu0 0
    %1072 = vmatprep.subr.bf16.mxu0 0
    %1073 = vmatpush1.bf16.msra.mxu0 0
    %1074 = vmatprep.mubr.bf16.mxu0 0
    %1075 = vmatmul.mubr.bf16.gmra.mrb[0].mxu0 %v958
    %v1076 = vpop.f32.mrb[0].mxu0
    %v1077 = vadd.f32 0.0, %v1076
    %v1078 = vpop.f32.mrb[0].mxu0
    %v1079 = vadd.f32 0.0, %v1078
    %v1080 = vpop.f32.mrb[0].mxu0
    %v1081 = vpop.f32.mrb[0].mxu0
    %1082 = vdwg.mxu0
    %1083 = vmatprep.subr.bf16.mxu0 %v932
    %1084 = vmatpush1.bf16.msra.mxu0 %v931
    %1085 = vmatprep.subr.bf16.mxu0 %v940
    %1086 = vmatpush1.bf16.msra.mxu0 %v939
    %1087 = vmatprep.subr.bf16.mxu0 0
    %1088 = vmatpush1.bf16.msra.mxu0 0
    %1089 = vmatprep.subr.bf16.mxu0 0
    %1090 = vmatpush1.bf16.msra.mxu0 0
    %1091 = vmatprep.subr.bf16.mxu0 0
    %1092 = vmatpush1.bf16.msra.mxu0 0
    %1093 = vmatprep.subr.bf16.mxu0 0
    %1094 = vmatpush1.bf16.msra.mxu0 0
    %1095 = vmatprep.subr.bf16.mxu0 0
    %1096 = vmatpush1.bf16.msra.mxu0 0
    %1097 = vmatprep.subr.bf16.mxu0 0
    %1098 = vmatpush1.bf16.msra.mxu0 0
    %1099 = vmatprep.subr.bf16.mxu0 0
    %1100 = vmatpush1.bf16.msra.mxu0 0
    %1101 = vmatprep.subr.bf16.mxu0 0
    %1102 = vmatpush1.bf16.msra.mxu0 0
    %1103 = vmatprep.subr.bf16.mxu0 0
    %1104 = vmatpush1.bf16.msra.mxu0 0
    %1105 = vmatprep.subr.bf16.mxu0 0
    %1106 = vmatpush1.bf16.msra.mxu0 0
    %1107 = vmatprep.subr.bf16.mxu0 0
    %1108 = vmatpush1.bf16.msra.mxu0 0
    %1109 = vmatprep.subr.bf16.mxu0 0
    %1110 = vmatpush1.bf16.msra.mxu0 0
    %1111 = vmatprep.subr.bf16.mxu0 0
    %1112 = vmatpush1.bf16.msra.mxu0 0
    %1113 = vmatprep.subr.bf16.mxu0 0
    %1114 = vmatpush1.bf16.msra.mxu0 0
    %1115 = vmatprep.mubr.bf16.mxu0 0
    %1116 = vmatmul.mubr.bf16.gmra.mrb[0].mxu0 %v958
    %v1117 = vpop.f32.mrb[0].mxu0
    %v1118 = vadd.f32 0.0, %v1117
    %v1119 = vpop.f32.mrb[0].mxu0
    %v1120 = vadd.f32 0.0, %v1119
    %v1121 = vpop.f32.mrb[0].mxu0
    %v1122 = vpop.f32.mrb[0].mxu0
    %1123 = vdwg.mxu0
    %v1124 = vmul.f32 %v731, %v995
    %v1125 = vmul.f32 %v733, %v997
    %v1126 = vmul.f32 %v772, %v1036
    %v1127 = vmul.f32 %v774, %v1038
    %v1128 = vmul.f32 %v813, %v1077
    %v1129 = vmul.f32 %v815, %v1079
    %v1130 = vmul.f32 %v854, %v1118
    %v1131 = vmul.f32 %v856, %v1120
    %v1132 = vld [vmem:[%s16] sm:$0xff]
    %v1133 = vld [vmem:[%s16 + $0x8] sm:$0xff]
    %v1134 = vld [vmem:[%s16 + $0x10] sm:$0xff]
    %v1135 = vld [vmem:[%s16 + $0x18] sm:$0xff]
    %v1136 = vld [vmem:[%s16 + $0x20] sm:$0xff]
    %v1137 = vld [vmem:[%s16 + $0x28] sm:$0xff]
    %v1138 = vld [vmem:[%s16 + $0x30] sm:$0xff]
    %v1139 = vld [vmem:[%s16 + $0x38] sm:$0xff]
    %v1140 = vld [vmem:[%s16 + $0x40] sm:$0xff]
    %v1141 = vld [vmem:[%s16 + $0x48] sm:$0xff]
    %v1142 = vld [vmem:[%s16 + $0x50] sm:$0xff]
    %v1143 = vld [vmem:[%s16 + $0x58] sm:$0xff]
    %v1144 = vld [vmem:[%s16 + $0x60] sm:$0xff]
    %v1145 = vld [vmem:[%s16 + $0x68] sm:$0xff]
    %v1146 = vld [vmem:[%s16 + $0x70] sm:$0xff]
    %v1147 = vld [vmem:[%s16 + $0x78] sm:$0xff]
    %v1148 = vld [vmem:[%s16 + $0x80] sm:$0xff]
    %v1149 = vld [vmem:[%s16 + $0x88] sm:$0xff]
    %v1150 = vld [vmem:[%s16 + $0x90] sm:$0xff]
    %v1151 = vld [vmem:[%s16 + $0x98] sm:$0xff]
    %v1152 = vld [vmem:[%s16 + $0xa0] sm:$0xff]
    %v1153 = vld [vmem:[%s16 + $0xa8] sm:$0xff]
    %v1154 = vld [vmem:[%s16 + $0xb0] sm:$0xff]
    %v1155 = vld [vmem:[%s16 + $0xb8] sm:$0xff]
    %v1156 = vld [vmem:[%s16 + $0xc0] sm:$0xff]
    %v1157 = vld [vmem:[%s16 + $0xc8] sm:$0xff]
    %v1158 = vld [vmem:[%s16 + $0xd0] sm:$0xff]
    %v1159 = vld [vmem:[%s16 + $0xd8] sm:$0xff]
    %v1160 = vld [vmem:[%s16 + $0xe0] sm:$0xff]
    %v1161 = vld [vmem:[%s16 + $0xe8] sm:$0xff]
    %v1162 = vld [vmem:[%s16 + $0xf0] sm:$0xff]
    %v1163 = vld [vmem:[%s16 + $0xf8] sm:$0xff]
    %v1164 = vld [vmem:[%s16 + $0x100] sm:$0xff]
    %v1165 = vld [vmem:[%s16 + $0x108] sm:$0xff]
    %v1166 = vld [vmem:[%s16 + $0x110] sm:$0xff]
    %v1167 = vld [vmem:[%s16 + $0x118] sm:$0xff]
    %v1168 = vld [vmem:[%s16 + $0x120] sm:$0xff]
    %v1169 = vld [vmem:[%s16 + $0x128] sm:$0xff]
    %v1170 = vld [vmem:[%s16 + $0x130] sm:$0xff]
    %v1171 = vld [vmem:[%s16 + $0x138] sm:$0xff]
    %v1172 = vld [vmem:[%s16 + $0x140] sm:$0xff]
    %v1173 = vld [vmem:[%s16 + $0x148] sm:$0xff]
    %v1174 = vld [vmem:[%s16 + $0x150] sm:$0xff]
    %v1175 = vld [vmem:[%s16 + $0x158] sm:$0xff]
    %v1176 = vld [vmem:[%s16 + $0x160] sm:$0xff]
    %v1177 = vld [vmem:[%s16 + $0x168] sm:$0xff]
    %v1178 = vld [vmem:[%s16 + $0x170] sm:$0xff]
    %v1179 = vld [vmem:[%s16 + $0x178] sm:$0xff]
    %v1180 = vld [vmem:[%s16 + $0x180] sm:$0xff]
    %v1181 = vld [vmem:[%s16 + $0x188] sm:$0xff]
    %v1182 = vld [vmem:[%s16 + $0x190] sm:$0xff]
    %v1183 = vld [vmem:[%s16 + $0x198] sm:$0xff]
    %v1184 = vld [vmem:[%s16 + $0x1a0] sm:$0xff]
    %v1185 = vld [vmem:[%s16 + $0x1a8] sm:$0xff]
    %v1186 = vld [vmem:[%s16 + $0x1b0] sm:$0xff]
    %v1187 = vld [vmem:[%s16 + $0x1b8] sm:$0xff]
    %v1188 = vld [vmem:[%s16 + $0x1c0] sm:$0xff]
    %v1189 = vld [vmem:[%s16 + $0x1c8] sm:$0xff]
    %v1190 = vld [vmem:[%s16 + $0x1d0] sm:$0xff]
    %v1191 = vld [vmem:[%s16 + $0x1d8] sm:$0xff]
    %v1192 = vld [vmem:[%s16 + $0x1e0] sm:$0xff]
    %v1193 = vld [vmem:[%s16 + $0x1e8] sm:$0xff]
    %v1194 = vld [vmem:[%s16 + $0x1f0] sm:$0xff]
    %v1195 = vld [vmem:[%s16 + $0x1f8] sm:$0xff]
    %v1196 = vld [vmem:[%s16 + $0x200] sm:$0xff]
    %v1197 = vld [vmem:[%s16 + $0x208] sm:$0xff]
    %v1198 = vld [vmem:[%s16 + $0x210] sm:$0xff]
    %v1199 = vld [vmem:[%s16 + $0x218] sm:$0xff]
    %v1200 = vld [vmem:[%s16 + $0x220] sm:$0xff]
    %v1201 = vld [vmem:[%s16 + $0x228] sm:$0xff]
    %v1202 = vld [vmem:[%s16 + $0x230] sm:$0xff]
    %v1203 = vld [vmem:[%s16 + $0x238] sm:$0xff]
    %v1204 = vld [vmem:[%s16 + $0x240] sm:$0xff]
    %v1205 = vld [vmem:[%s16 + $0x248] sm:$0xff]
    %v1206 = vld [vmem:[%s16 + $0x250] sm:$0xff]
    %v1207 = vld [vmem:[%s16 + $0x258] sm:$0xff]
    %v1208 = vld [vmem:[%s16 + $0x260] sm:$0xff]
    %v1209 = vld [vmem:[%s16 + $0x268] sm:$0xff]
    %v1210 = vld [vmem:[%s16 + $0x270] sm:$0xff]
    %v1211 = vld [vmem:[%s16 + $0x278] sm:$0xff]
    %v1212 = vld [vmem:[%s16 + $0x280] sm:$0xff]
    %v1213 = vld [vmem:[%s16 + $0x288] sm:$0xff]
    %v1214 = vld [vmem:[%s16 + $0x290] sm:$0xff]
    %v1215 = vld [vmem:[%s16 + $0x298] sm:$0xff]
    %v1216 = vld [vmem:[%s16 + $0x2a0] sm:$0xff]
    %v1217 = vld [vmem:[%s16 + $0x2a8] sm:$0xff]
    %v1218 = vld [vmem:[%s16 + $0x2b0] sm:$0xff]
    %v1219 = vld [vmem:[%s16 + $0x2b8] sm:$0xff]
    %v1220 = vld [vmem:[%s16 + $0x2c0] sm:$0xff]
    %v1221 = vld [vmem:[%s16 + $0x2c8] sm:$0xff]
    %v1222 = vld [vmem:[%s16 + $0x2d0] sm:$0xff]
    %v1223 = vld [vmem:[%s16 + $0x2d8] sm:$0xff]
    %v1224 = vld [vmem:[%s16 + $0x2e0] sm:$0xff]
    %v1225 = vld [vmem:[%s16 + $0x2e8] sm:$0xff]
    %v1226 = vld [vmem:[%s16 + $0x2f0] sm:$0xff]
    %v1227 = vld [vmem:[%s16 + $0x2f8] sm:$0xff]
    %v1228 = vld [vmem:[%s16 + $0x300] sm:$0xff]
    %v1229 = vld [vmem:[%s16 + $0x308] sm:$0xff]
    %v1230 = vld [vmem:[%s16 + $0x310] sm:$0xff]
    %v1231 = vld [vmem:[%s16 + $0x318] sm:$0xff]
    %v1232 = vld [vmem:[%s16 + $0x320] sm:$0xff]
    %v1233 = vld [vmem:[%s16 + $0x328] sm:$0xff]
    %v1234 = vld [vmem:[%s16 + $0x330] sm:$0xff]
    %v1235 = vld [vmem:[%s16 + $0x338] sm:$0xff]
    %v1236 = vld [vmem:[%s16 + $0x340] sm:$0xff]
    %v1237 = vld [vmem:[%s16 + $0x348] sm:$0xff]
    %v1238 = vld [vmem:[%s16 + $0x350] sm:$0xff]
    %v1239 = vld [vmem:[%s16 + $0x358] sm:$0xff]
    %v1240 = vld [vmem:[%s16 + $0x360] sm:$0xff]
    %v1241 = vld [vmem:[%s16 + $0x368] sm:$0xff]
    %v1242 = vld [vmem:[%s16 + $0x370] sm:$0xff]
    %v1243 = vld [vmem:[%s16 + $0x378] sm:$0xff]
    %v1244 = vld [vmem:[%s16 + $0x380] sm:$0xff]
    %v1245 = vld [vmem:[%s16 + $0x388] sm:$0xff]
    %v1246 = vld [vmem:[%s16 + $0x390] sm:$0xff]
    %v1247 = vld [vmem:[%s16 + $0x398] sm:$0xff]
    %v1248 = vld [vmem:[%s16 + $0x3a0] sm:$0xff]
    %v1249 = vld [vmem:[%s16 + $0x3a8] sm:$0xff]
    %v1250 = vld [vmem:[%s16 + $0x3b0] sm:$0xff]
    %v1251 = vld [vmem:[%s16 + $0x3b8] sm:$0xff]
    %v1252 = vld [vmem:[%s16 + $0x3c0] sm:$0xff]
    %v1253 = vld [vmem:[%s16 + $0x3c8] sm:$0xff]
    %v1254 = vld [vmem:[%s16 + $0x3d0] sm:$0xff]
    %v1255 = vld [vmem:[%s16 + $0x3d8] sm:$0xff]
    %v1256 = vld [vmem:[%s16 + $0x3e0] sm:$0xff]
    %v1257 = vld [vmem:[%s16 + $0x3e8] sm:$0xff]
    %v1258 = vld [vmem:[%s16 + $0x3f0] sm:$0xff]
    %v1259 = vld [vmem:[%s16 + $0x3f8] sm:$0xff]
    %v1260 = vld [vmem:[%s17] sm:$0x1]
    %v1262 = vlaneseq
    %v1263 = vshrl.u32 %v1262, 7
    %v1264 = vsub.s32 0, %v1263
    %v1265 = vrot.slane %v1260, %v1264
    %1267 = vmatprep.subr.mxu0 0.0
    %1268 = vmatpush1.msra.mxu0 %v1132
    %1269 = vmatprep.subr.mxu0 0.0
    %1270 = vmatpush1.msra.mxu0 %v1133
    %1271 = vmatprep.subr.mxu0 0.0
    %1272 = vmatpush1.msra.mxu0 %v1134
    %1273 = vmatprep.subr.mxu0 0.0
    %1274 = vmatpush1.msra.mxu0 %v1135
    %1275 = vmatprep.subr.mxu0 0.0
    %1276 = vmatpush1.msra.mxu0 %v1136
    %1277 = vmatprep.subr.mxu0 0.0
    %1278 = vmatpush1.msra.mxu0 %v1137
    %1279 = vmatprep.subr.mxu0 0.0
    %1280 = vmatpush1.msra.mxu0 %v1138
    %1281 = vmatprep.subr.mxu0 0.0
    %1282 = vmatpush1.msra.mxu0 %v1139
    %1283 = vmatprep.subr.mxu0 0.0
    %1284 = vmatpush1.msra.mxu0 %v1140
    %1285 = vmatprep.subr.mxu0 0.0
    %1286 = vmatpush1.msra.mxu0 %v1141
    %1287 = vmatprep.subr.mxu0 0.0
    %1288 = vmatpush1.msra.mxu0 %v1142
    %1289 = vmatprep.subr.mxu0 0.0
    %1290 = vmatpush1.msra.mxu0 %v1143
    %1291 = vmatprep.subr.mxu0 0.0
    %1292 = vmatpush1.msra.mxu0 %v1144
    %1293 = vmatprep.subr.mxu0 0.0
    %1294 = vmatpush1.msra.mxu0 %v1145
    %1295 = vmatprep.subr.mxu0 0.0
    %1296 = vmatpush1.msra.mxu0 %v1146
    %1297 = vmatprep.subr.mxu0 0.0
    %1298 = vmatpush1.msra.mxu0 %v1147
    %1299 = vmatprep.subr.mxu0 0.0
    %1300 = vmatpush1.msra.mxu0 %v1148
    %1301 = vmatprep.subr.mxu0 0.0
    %1302 = vmatpush1.msra.mxu0 %v1149
    %1303 = vmatprep.subr.mxu0 0.0
    %1304 = vmatpush1.msra.mxu0 %v1150
    %1305 = vmatprep.subr.mxu0 0.0
    %1306 = vmatpush1.msra.mxu0 %v1151
    %1307 = vmatprep.subr.mxu0 0.0
    %1308 = vmatpush1.msra.mxu0 %v1152
    %1309 = vmatprep.subr.mxu0 0.0
    %1310 = vmatpush1.msra.mxu0 %v1153
    %1311 = vmatprep.subr.mxu0 0.0
    %1312 = vmatpush1.msra.mxu0 %v1154
    %1313 = vmatprep.subr.mxu0 0.0
    %1314 = vmatpush1.msra.mxu0 %v1155
    %1315 = vmatprep.subr.mxu0 0.0
    %1316 = vmatpush1.msra.mxu0 %v1156
    %1317 = vmatprep.subr.mxu0 0.0
    %1318 = vmatpush1.msra.mxu0 %v1157
    %1319 = vmatprep.subr.mxu0 0.0
    %1320 = vmatpush1.msra.mxu0 %v1158
    %1321 = vmatprep.subr.mxu0 0.0
    %1322 = vmatpush1.msra.mxu0 %v1159
    %1323 = vmatprep.subr.mxu0 0.0
    %1324 = vmatpush1.msra.mxu0 %v1160
    %1325 = vmatprep.subr.mxu0 0.0
    %1326 = vmatpush1.msra.mxu0 %v1161
    %1327 = vmatprep.subr.mxu0 0.0
    %1328 = vmatpush1.msra.mxu0 %v1162
    %1329 = vmatprep.subr.mxu0 0.0
    %1330 = vmatpush1.msra.mxu0 %v1163
    %1331 = vmatprep.mubr.f32.mxu0 %v1125
    %1332 = vmatmul.mubr.f32.gmra.mrb[0].mxu0 %v1124
    %v1333 = vpop.f32.mrb[0].mxu0
    %v1334 = vadd.f32 %v1265, %v1333
    %v1335 = vpop.f32.mrb[0].mxu0
    %1336 = vdwg.mxu0
    %1337 = vmatprep.subr.mxu0 0.0
    %1338 = vmatpush1.msra.mxu0 %v1164
    %1339 = vmatprep.subr.mxu0 0.0
    %1340 = vmatpush1.msra.mxu0 %v1165
    %1341 = vmatprep.subr.mxu0 0.0
    %1342 = vmatpush1.msra.mxu0 %v1166
    %1343 = vmatprep.subr.mxu0 0.0
    %1344 = vmatpush1.msra.mxu0 %v1167
    %1345 = vmatprep.subr.mxu0 0.0
    %1346 = vmatpush1.msra.mxu0 %v1168
    %1347 = vmatprep.subr.mxu0 0.0
    %1348 = vmatpush1.msra.mxu0 %v1169
    %1349 = vmatprep.subr.mxu0 0.0
    %1350 = vmatpush1.msra.mxu0 %v1170
    %1351 = vmatprep.subr.mxu0 0.0
    %1352 = vmatpush1.msra.mxu0 %v1171
    %1353 = vmatprep.subr.mxu0 0.0
    %1354 = vmatpush1.msra.mxu0 %v1172
    %1355 = vmatprep.subr.mxu0 0.0
    %1356 = vmatpush1.msra.mxu0 %v1173
    %1357 = vmatprep.subr.mxu0 0.0
    %1358 = vmatpush1.msra.mxu0 %v1174
    %1359 = vmatprep.subr.mxu0 0.0
    %1360 = vmatpush1.msra.mxu0 %v1175
    %1361 = vmatprep.subr.mxu0 0.0
    %1362 = vmatpush1.msra.mxu0 %v1176
    %1363 = vmatprep.subr.mxu0 0.0
    %1364 = vmatpush1.msra.mxu0 %v1177
    %1365 = vmatprep.subr.mxu0 0.0
    %1366 = vmatpush1.msra.mxu0 %v1178
    %1367 = vmatprep.subr.mxu0 0.0
    %1368 = vmatpush1.msra.mxu0 %v1179
    %1369 = vmatprep.subr.mxu0 0.0
    %1370 = vmatpush1.msra.mxu0 %v1180
    %1371 = vmatprep.subr.mxu0 0.0
    %1372 = vmatpush1.msra.mxu0 %v1181
    %1373 = vmatprep.subr.mxu0 0.0
    %1374 = vmatpush1.msra.mxu0 %v1182
    %1375 = vmatprep.subr.mxu0 0.0
    %1376 = vmatpush1.msra.mxu0 %v1183
    %1377 = vmatprep.subr.mxu0 0.0
    %1378 = vmatpush1.msra.mxu0 %v1184
    %1379 = vmatprep.subr.mxu0 0.0
    %1380 = vmatpush1.msra.mxu0 %v1185
    %1381 = vmatprep.subr.mxu0 0.0
    %1382 = vmatpush1.msra.mxu0 %v1186
    %1383 = vmatprep.subr.mxu0 0.0
    %1384 = vmatpush1.msra.mxu0 %v1187
    %1385 = vmatprep.subr.mxu0 0.0
    %1386 = vmatpush1.msra.mxu0 %v1188
    %1387 = vmatprep.subr.mxu0 0.0
    %1388 = vmatpush1.msra.mxu0 %v1189
    %1389 = vmatprep.subr.mxu0 0.0
    %1390 = vmatpush1.msra.mxu0 %v1190
    %1391 = vmatprep.subr.mxu0 0.0
    %1392 = vmatpush1.msra.mxu0 %v1191
    %1393 = vmatprep.subr.mxu0 0.0
    %1394 = vmatpush1.msra.mxu0 %v1192
    %1395 = vmatprep.subr.mxu0 0.0
    %1396 = vmatpush1.msra.mxu0 %v1193
    %1397 = vmatprep.subr.mxu0 0.0
    %1398 = vmatpush1.msra.mxu0 %v1194
    %1399 = vmatprep.subr.mxu0 0.0
    %1400 = vmatpush1.msra.mxu0 %v1195
    %1401 = vmatprep.mubr.f32.mxu0 %v1127
    %1402 = vmatmul.mubr.f32.gmra.mrb[0].mxu0 %v1126
    %v1403 = vpop.f32.mrb[0].mxu0
    %v1404 = vadd.f32 %v1334, %v1403
    %v1405 = vpop.f32.mrb[0].mxu0
    %1406 = vdwg.mxu0
    %1407 = vmatprep.subr.mxu0 0.0
    %1408 = vmatpush1.msra.mxu0 %v1196
    %1409 = vmatprep.subr.mxu0 0.0
    %1410 = vmatpush1.msra.mxu0 %v1197
    %1411 = vmatprep.subr.mxu0 0.0
    %1412 = vmatpush1.msra.mxu0 %v1198
    %1413 = vmatprep.subr.mxu0 0.0
    %1414 = vmatpush1.msra.mxu0 %v1199
    %1415 = vmatprep.subr.mxu0 0.0
    %1416 = vmatpush1.msra.mxu0 %v1200
    %1417 = vmatprep.subr.mxu0 0.0
    %1418 = vmatpush1.msra.mxu0 %v1201
    %1419 = vmatprep.subr.mxu0 0.0
    %1420 = vmatpush1.msra.mxu0 %v1202
    %1421 = vmatprep.subr.mxu0 0.0
    %1422 = vmatpush1.msra.mxu0 %v1203
    %1423 = vmatprep.subr.mxu0 0.0
    %1424 = vmatpush1.msra.mxu0 %v1204
    %1425 = vmatprep.subr.mxu0 0.0
    %1426 = vmatpush1.msra.mxu0 %v1205
    %1427 = vmatprep.subr.mxu0 0.0
    %1428 = vmatpush1.msra.mxu0 %v1206
    %1429 = vmatprep.subr.mxu0 0.0
    %1430 = vmatpush1.msra.mxu0 %v1207
    %1431 = vmatprep.subr.mxu0 0.0
    %1432 = vmatpush1.msra.mxu0 %v1208
    %1433 = vmatprep.subr.mxu0 0.0
    %1434 = vmatpush1.msra.mxu0 %v1209
    %1435 = vmatprep.subr.mxu0 0.0
    %1436 = vmatpush1.msra.mxu0 %v1210
    %1437 = vmatprep.subr.mxu0 0.0
    %1438 = vmatpush1.msra.mxu0 %v1211
    %1439 = vmatprep.subr.mxu0 0.0
    %1440 = vmatpush1.msra.mxu0 %v1212
    %1441 = vmatprep.subr.mxu0 0.0
    %1442 = vmatpush1.msra.mxu0 %v1213
    %1443 = vmatprep.subr.mxu0 0.0
    %1444 = vmatpush1.msra.mxu0 %v1214
    %1445 = vmatprep.subr.mxu0 0.0
    %1446 = vmatpush1.msra.mxu0 %v1215
    %1447 = vmatprep.subr.mxu0 0.0
    %1448 = vmatpush1.msra.mxu0 %v1216
    %1449 = vmatprep.subr.mxu0 0.0
    %1450 = vmatpush1.msra.mxu0 %v1217
    %1451 = vmatprep.subr.mxu0 0.0
    %1452 = vmatpush1.msra.mxu0 %v1218
    %1453 = vmatprep.subr.mxu0 0.0
    %1454 = vmatpush1.msra.mxu0 %v1219
    %1455 = vmatprep.subr.mxu0 0.0
    %1456 = vmatpush1.msra.mxu0 %v1220
    %1457 = vmatprep.subr.mxu0 0.0
    %1458 = vmatpush1.msra.mxu0 %v1221
    %1459 = vmatprep.subr.mxu0 0.0
    %1460 = vmatpush1.msra.mxu0 %v1222
    %1461 = vmatprep.subr.mxu0 0.0
    %1462 = vmatpush1.msra.mxu0 %v1223
    %1463 = vmatprep.subr.mxu0 0.0
    %1464 = vmatpush1.msra.mxu0 %v1224
    %1465 = vmatprep.subr.mxu0 0.0
    %1466 = vmatpush1.msra.mxu0 %v1225
    %1467 = vmatprep.subr.mxu0 0.0
    %1468 = vmatpush1.msra.mxu0 %v1226
    %1469 = vmatprep.subr.mxu0 0.0
    %1470 = vmatpush1.msra.mxu0 %v1227
    %1471 = vmatprep.mubr.f32.mxu0 %v1129
    %1472 = vmatmul.mubr.f32.gmra.mrb[0].mxu0 %v1128
    %v1473 = vpop.f32.mrb[0].mxu0
    %v1474 = vadd.f32 %v1404, %v1473
    %v1475 = vpop.f32.mrb[0].mxu0
    %1476 = vdwg.mxu0
    %1477 = vmatprep.subr.mxu0 0.0
    %1478 = vmatpush1.msra.mxu0 %v1228
    %1479 = vmatprep.subr.mxu0 0.0
    %1480 = vmatpush1.msra.mxu0 %v1229
    %1481 = vmatprep.subr.mxu0 0.0
    %1482 = vmatpush1.msra.mxu0 %v1230
    %1483 = vmatprep.subr.mxu0 0.0
    %1484 = vmatpush1.msra.mxu0 %v1231
    %1485 = vmatprep.subr.mxu0 0.0
    %1486 = vmatpush1.msra.mxu0 %v1232
    %1487 = vmatprep.subr.mxu0 0.0
    %1488 = vmatpush1.msra.mxu0 %v1233
    %1489 = vmatprep.subr.mxu0 0.0
    %1490 = vmatpush1.msra.mxu0 %v1234
    %1491 = vmatprep.subr.mxu0 0.0
    %1492 = vmatpush1.msra.mxu0 %v1235
    %1493 = vmatprep.subr.mxu0 0.0
    %1494 = vmatpush1.msra.mxu0 %v1236
    %1495 = vmatprep.subr.mxu0 0.0
    %1496 = vmatpush1.msra.mxu0 %v1237
    %1497 = vmatprep.subr.mxu0 0.0
    %1498 = vmatpush1.msra.mxu0 %v1238
    %1499 = vmatprep.subr.mxu0 0.0
    %1500 = vmatpush1.msra.mxu0 %v1239
    %1501 = vmatprep.subr.mxu0 0.0
    %1502 = vmatpush1.msra.mxu0 %v1240
    %1503 = vmatprep.subr.mxu0 0.0
    %1504 = vmatpush1.msra.mxu0 %v1241
    %1505 = vmatprep.subr.mxu0 0.0
    %1506 = vmatpush1.msra.mxu0 %v1242
    %1507 = vmatprep.subr.mxu0 0.0
    %1508 = vmatpush1.msra.mxu0 %v1243
    %1509 = vmatprep.subr.mxu0 0.0
    %1510 = vmatpush1.msra.mxu0 %v1244
    %1511 = vmatprep.subr.mxu0 0.0
    %1512 = vmatpush1.msra.mxu0 %v1245
    %1513 = vmatprep.subr.mxu0 0.0
    %1514 = vmatpush1.msra.mxu0 %v1246
    %1515 = vmatprep.subr.mxu0 0.0
    %1516 = vmatpush1.msra.mxu0 %v1247
    %1517 = vmatprep.subr.mxu0 0.0
    %1518 = vmatpush1.msra.mxu0 %v1248
    %1519 = vmatprep.subr.mxu0 0.0
    %1520 = vmatpush1.msra.mxu0 %v1249
    %1521 = vmatprep.subr.mxu0 0.0
    %1522 = vmatpush1.msra.mxu0 %v1250
    %1523 = vmatprep.subr.mxu0 0.0
    %1524 = vmatpush1.msra.mxu0 %v1251
    %1525 = vmatprep.subr.mxu0 0.0
    %1526 = vmatpush1.msra.mxu0 %v1252
    %1527 = vmatprep.subr.mxu0 0.0
    %1528 = vmatpush1.msra.mxu0 %v1253
    %1529 = vmatprep.subr.mxu0 0.0
    %1530 = vmatpush1.msra.mxu0 %v1254
    %1531 = vmatprep.subr.mxu0 0.0
    %1532 = vmatpush1.msra.mxu0 %v1255
    %1533 = vmatprep.subr.mxu0 0.0
    %1534 = vmatpush1.msra.mxu0 %v1256
    %1535 = vmatprep.subr.mxu0 0.0
    %1536 = vmatpush1.msra.mxu0 %v1257
    %1537 = vmatprep.subr.mxu0 0.0
    %1538 = vmatpush1.msra.mxu0 %v1258
    %1539 = vmatprep.subr.mxu0 0.0
    %1540 = vmatpush1.msra.mxu0 %v1259
    %1541 = vmatprep.mubr.f32.mxu0 %v1131
    %1542 = vmatmul.mubr.f32.gmra.mrb[0].mxu0 %v1130
    %v1543 = vpop.f32.mrb[0].mxu0
    %v1544 = vadd.f32 %v1474, %v1543
    %v1545 = vpop.f32.mrb[0].mxu0
    %1546 = vdwg.mxu0
    %v1547 = vpack.c.bf16 %v1544, %v1544
    %v1548 = vld [vmem:[%s18] sm:$0xf]
    %v1549 = vld [vmem:[%s18 + $0x4] sm:$0xf]
    %v1550 = vld [vmem:[%s18 + $0x8] sm:$0xf]
    %v1551 = vld [vmem:[%s18 + $0xc] sm:$0xf]
    %v1552 = vpack.c.bf16 %v591, %v591
    %v1553 = vld [vmem:[%s19] sm:$0xf]
    %v1554 = vld [vmem:[%s19 + $0x4] sm:$0xf]
    %v1555 = vld [vmem:[%s19 + $0x8] sm:$0xf]
    %v1556 = vld [vmem:[%s19 + $0xc] sm:$0xf]
    %v1561 = vunpack.c.l.b16 %v1553
    %v1562 = vunpack.c.l.b16 %v1554
    %v1563 = vunpack.c.l.b16 %v1555
    %v1564 = vunpack.c.l.b16 %v1556
    %v1565 = vpack.c.b16 %v1562, %v1561
    %v1566 = vpack.c.b16 %v1564, %v1563
    %v1570 = vsel %vm287, %v1552, 0
    %1572 = vmatprep.subr.bf16.mxu0 0
    %1573 = vmatpush1.bf16.msra.mxu0 %v1565
    %1574 = vmatprep.subr.bf16.mxu0 0
    %1575 = vmatpush1.bf16.msra.mxu0 %v1566
    %1576 = vmatprep.subr.bf16.mxu0 0
    %1577 = vmatpush1.bf16.msra.mxu0 0
    %1578 = vmatprep.subr.bf16.mxu0 0
    %1579 = vmatpush1.bf16.msra.mxu0 0
    %1580 = vmatprep.subr.bf16.mxu0 0
    %1581 = vmatpush1.bf16.msra.mxu0 0
    %1582 = vmatprep.subr.bf16.mxu0 0
    %1583 = vmatpush1.bf16.msra.mxu0 0
    %1584 = vmatprep.subr.bf16.mxu0 0
    %1585 = vmatpush1.bf16.msra.mxu0 0
    %1586 = vmatprep.subr.bf16.mxu0 0
    %1587 = vmatpush1.bf16.msra.mxu0 0
    %1588 = vmatprep.subr.bf16.mxu0 0
    %1589 = vmatpush1.bf16.msra.mxu0 0
    %1590 = vmatprep.subr.bf16.mxu0 0
    %1591 = vmatpush1.bf16.msra.mxu0 0
    %1592 = vmatprep.subr.bf16.mxu0 0
    %1593 = vmatpush1.bf16.msra.mxu0 0
    %1594 = vmatprep.subr.bf16.mxu0 0
    %1595 = vmatpush1.bf16.msra.mxu0 0
    %1596 = vmatprep.subr.bf16.mxu0 0
    %1597 = vmatpush1.bf16.msra.mxu0 0
    %1598 = vmatprep.subr.bf16.mxu0 0
    %1599 = vmatpush1.bf16.msra.mxu0 0
    %1600 = vmatprep.subr.bf16.mxu0 0
    %1601 = vmatpush1.bf16.msra.mxu0 0
    %1602 = vmatprep.subr.bf16.mxu0 0
    %1603 = vmatpush1.bf16.msra.mxu0 0
    %1604 = vmatprep.mubr.bf16.mxu0 0
    %1605 = vmatmul.mubr.bf16.gmra.mrb[0].mxu0 %v1570
    %v1606 = vpop.f32.mrb[0].mxu0
    %v1607 = vadd.f32 0.0, %v1606
    %v1608 = vpop.f32.mrb[0].mxu0
    %v1609 = vpop.f32.mrb[0].mxu0
    %v1610 = vpop.f32.mrb[0].mxu0
    %1611 = vdwg.mxu0
    %v1616 = vunpack.c.l.b16 %v1548
    %v1617 = vunpack.c.l.b16 %v1549
    %v1618 = vunpack.c.l.b16 %v1550
    %v1619 = vunpack.c.l.b16 %v1551
    %v1620 = vpack.c.b16 %v1617, %v1616
    %v1621 = vpack.c.b16 %v1619, %v1618
    %v1625 = vsel %vm287, %v1547, 0
    %1627 = vmatprep.subr.bf16.mxu0 0
    %1628 = vmatpush1.bf16.msra.mxu0 %v1620
    %1629 = vmatprep.subr.bf16.mxu0 0
    %1630 = vmatpush1.bf16.msra.mxu0 %v1621
    %1631 = vmatprep.subr.bf16.mxu0 0
    %1632 = vmatpush1.bf16.msra.mxu0 0
    %1633 = vmatprep.subr.bf16.mxu0 0
    %1634 = vmatpush1.bf16.msra.mxu0 0
    %1635 = vmatprep.subr.bf16.mxu0 0
    %1636 = vmatpush1.bf16.msra.mxu0 0
    %1637 = vmatprep.subr.bf16.mxu0 0
    %1638 = vmatpush1.bf16.msra.mxu0 0
    %1639 = vmatprep.subr.bf16.mxu0 0
    %1640 = vmatpush1.bf16.msra.mxu0 0
    %1641 = vmatprep.subr.bf16.mxu0 0
    %1642 = vmatpush1.bf16.msra.mxu0 0
    %1643 = vmatprep.subr.bf16.mxu0 0
    %1644 = vmatpush1.bf16.msra.mxu0 0
    %1645 = vmatprep.subr.bf16.mxu0 0
    %1646 = vmatpush1.bf16.msra.mxu0 0
    %1647 = vmatprep.subr.bf16.mxu0 0
    %1648 = vmatpush1.bf16.msra.mxu0 0
    %1649 = vmatprep.subr.bf16.mxu0 0
    %1650 = vmatpush1.bf16.msra.mxu0 0
    %1651 = vmatprep.subr.bf16.mxu0 0
    %1652 = vmatpush1.bf16.msra.mxu0 0
    %1653 = vmatprep.subr.bf16.mxu0 0
    %1654 = vmatpush1.bf16.msra.mxu0 0
    %1655 = vmatprep.subr.bf16.mxu0 0
    %1656 = vmatpush1.bf16.msra.mxu0 0
    %1657 = vmatprep.subr.bf16.mxu0 0
    %1658 = vmatpush1.bf16.msra.mxu0 0
    %1659 = vmatprep.mubr.bf16.mxu0 0
    %1660 = vmatmul.mubr.bf16.gmra.mrb[0].mxu0 %v1625
    %v1661 = vpop.f32.mrb[0].mxu0
    %v1662 = vadd.f32 %v1607, %v1661
    %v1663 = vpop.f32.mrb[0].mxu0
    %v1664 = vpop.f32.mrb[0].mxu0
    %v1665 = vpop.f32.mrb[0].mxu0
    %1666 = vdwg.mxu0
    %v1667 = vld [vmem:[%s20] sm:$0x1]
    %v1669 = vlaneseq
    %v1670 = vshrl.u32 %v1669, 7
    %v1671 = vsub.s32 0, %v1670
    %v1672 = vrot.slane %v1667, %v1671
    %v1674 = vadd.f32 %v1662, %v1672
    %v1675 = vmax.f32 %v1674, 0.0
    %v1676 = vpack.c.bf16 %v1675, %v1675
    %v1677 = vld [vmem:[%s21] sm:$0xf]
    %v1678 = vld [vmem:[%s21 + $0x4] sm:$0xf]
    %v1679 = vld [vmem:[%s21 + $0x8] sm:$0xf]
    %v1680 = vld [vmem:[%s21 + $0xc] sm:$0xf]
    %v1681 = vld [vmem:[%s22] sm:$0x1]
    %v1683 = vlaneseq
    %v1684 = vshrl.u32 %v1683, 7
    %v1685 = vsub.s32 0, %v1684
    %v1686 = vrot.slane %v1681, %v1685
    %v1692 = vunpack.c.l.b16 %v1677
    %v1693 = vunpack.c.l.b16 %v1678
    %v1694 = vunpack.c.l.b16 %v1679
    %v1695 = vunpack.c.l.b16 %v1680
    %v1696 = vpack.c.b16 %v1693, %v1692
    %v1697 = vpack.c.b16 %v1695, %v1694
    %v1701 = vsel %vm287, %v1676, 0
    %1703 = vmatprep.subr.bf16.mxu0 0
    %1704 = vmatpush1.bf16.msra.mxu0 %v1696
    %1705 = vmatprep.subr.bf16.mxu0 0
    %1706 = vmatpush1.bf16.msra.mxu0 %v1697
    %1707 = vmatprep.subr.bf16.mxu0 0
    %1708 = vmatpush1.bf16.msra.mxu0 0
    %1709 = vmatprep.subr.bf16.mxu0 0
    %1710 = vmatpush1.bf16.msra.mxu0 0
    %1711 = vmatprep.subr.bf16.mxu0 0
    %1712 = vmatpush1.bf16.msra.mxu0 0
    %1713 = vmatprep.subr.bf16.mxu0 0
    %1714 = vmatpush1.bf16.msra.mxu0 0
    %1715 = vmatprep.subr.bf16.mxu0 0
    %1716 = vmatpush1.bf16.msra.mxu0 0
    %1717 = vmatprep.subr.bf16.mxu0 0
    %1718 = vmatpush1.bf16.msra.mxu0 0
    %1719 = vmatprep.subr.bf16.mxu0 0
    %1720 = vmatpush1.bf16.msra.mxu0 0
    %1721 = vmatprep.subr.bf16.mxu0 0
    %1722 = vmatpush1.bf16.msra.mxu0 0
    %1723 = vmatprep.subr.bf16.mxu0 0
    %1724 = vmatpush1.bf16.msra.mxu0 0
    %1725 = vmatprep.subr.bf16.mxu0 0
    %1726 = vmatpush1.bf16.msra.mxu0 0
    %1727 = vmatprep.subr.bf16.mxu0 0
    %1728 = vmatpush1.bf16.msra.mxu0 0
    %1729 = vmatprep.subr.bf16.mxu0 0
    %1730 = vmatpush1.bf16.msra.mxu0 0
    %1731 = vmatprep.subr.bf16.mxu0 0
    %1732 = vmatpush1.bf16.msra.mxu0 0
    %1733 = vmatprep.subr.bf16.mxu0 0
    %1734 = vmatpush1.bf16.msra.mxu0 0
    %1735 = vmatprep.mubr.bf16.mxu0 0
    %1736 = vmatmul.mubr.bf16.gmra.mrb[0].mxu0 %v1701
    %v1737 = vpop.f32.mrb[0].mxu0
    %v1738 = vadd.f32 %v1686, %v1737
    %v1739 = vpop.f32.mrb[0].mxu0
    %v1740 = vpop.f32.mrb[0].mxu0
    %v1741 = vpop.f32.mrb[0].mxu0
    %1742 = vdwg.mxu0
    %v1743 = vmax.f32 %v1738, 0.0
    %v1744 = vld [vmem:[%s23] sm:$0x1]
    %v1745 = vpack.c.bf16 %v1743, %v1743
    %v1746 = vld [vmem:[#allocation2] sm:$0x1]
    %1748 = vset.pattern.permute.xlu0 0
    %1749 = vperm.xlu0 %1748, %v1746
    %v1750 = vpop.permute.xlu0 %1749
    %v1752 = vlaneseq
    %v1753 = vshrl.u32 %v1752, 7
    %v1754 = vsub.s32 0, %v1753
    %v1755 = vrot.slane %v1750, %v1754
    %v1757 = vsel %vm130, %v1744, 0
    %v1760 = vsel %vm130, %v1745, 0
    %1762 = vmatprep.subr.bf16.mxu0 0
    %1763 = vmatpush1.bf16.xpose.msra.mxu0 %v1760
    %1764 = vmatprep.subr.bf16.mxu0 0
    %1765 = vmatpush1.bf16.xpose.msra.mxu0 0
    %1766 = vmatprep.subr.bf16.mxu0 0
    %1767 = vmatpush1.bf16.xpose.msra.mxu0 0
    %1768 = vmatprep.subr.bf16.mxu0 0
    %1769 = vmatpush1.bf16.xpose.msra.mxu0 0
    %1770 = vmatprep.subr.bf16.mxu0 0
    %1771 = vmatpush1.bf16.xpose.msra.mxu0 0
    %1772 = vmatprep.subr.bf16.mxu0 0
    %1773 = vmatpush1.bf16.xpose.msra.mxu0 0
    %1774 = vmatprep.subr.bf16.mxu0 0
    %1775 = vmatpush1.bf16.xpose.msra.mxu0 0
    %1776 = vmatprep.subr.bf16.mxu0 0
    %1777 = vmatpush1.bf16.xpose.msra.mxu0 0
    %1778 = vmatprep.subr.bf16.mxu0 0
    %1779 = vmatpush1.bf16.xpose.msra.mxu0 0
    %1780 = vmatprep.subr.bf16.mxu0 0
    %1781 = vmatpush1.bf16.xpose.msra.mxu0 0
    %1782 = vmatprep.subr.bf16.mxu0 0
    %1783 = vmatpush1.bf16.xpose.msra.mxu0 0
    %1784 = vmatprep.subr.bf16.mxu0 0
    %1785 = vmatpush1.bf16.xpose.msra.mxu0 0
    %1786 = vmatprep.subr.bf16.mxu0 0
    %1787 = vmatpush1.bf16.xpose.msra.mxu0 0
    %1788 = vmatprep.subr.bf16.mxu0 0
    %1789 = vmatpush1.bf16.xpose.msra.mxu0 0
    %1790 = vmatprep.subr.bf16.mxu0 0
    %1791 = vmatpush1.bf16.xpose.msra.mxu0 0
    %1792 = vmatprep.subr.bf16.mxu0 0
    %1793 = vmatpush1.bf16.xpose.msra.mxu0 0
    %1794 = vmatprep.mubr.bf16.mxu0 0
    %1795 = vmatmul.mubr.bf16.gmra.mrb[0].mxu0 %v1757
    %v1796 = vpop.f32.mrb[0].mxu0
    %v1797 = vadd.f32 %v1755, %v1796
    %v1798 = vpop.f32.mrb[0].mxu0
    %v1799 = vpop.f32.mrb[0].mxu0
    %v1800 = vpop.f32.mrb[0].mxu0
    %1801 = vdwg.mxu0
    %v1802 = vxor.u32 %v1797, 2147483648
    %v1803 = vmul.f32 %v1802, 1.442695
    %v1804 = vpow.pop %v1803
    %v1805 = vadd.f32 %v1804, 1.0
    %v1806 = vrcp.pop %v1805
    %v1807 = vmul.f32 1.0, %v1806
    %vm1808 = vcmask 57344
    %1809 = vst.msk [vmem:[#allocation3] sm:$0x1] %vm1808, %v1807
    // Predicated region
    $region102: #{tpu_custom_call.1} parent=1 // pred_check
      _
    $region103: #{tpu_custom_call.1} parent=1 // pred_check_branch
      %1811 = sbr.rel (0) target = $region105
    $region104: #{tpu_custom_call.1} parent=1 // pred_region
      %s1813 = ssub.s32 16, 16
      %1814 = vsyncadd [#allocation4], %s1813
      %s1816 = sshll.u32 [#allocation3], 4
      %s1817 = int_to_ptr.vmem [resolvable:$true] %s1816
      %1819 = dma.vmem_to_hbm [thread:$0]  %s1817, 16, %s25, [#allocation4]
    $region105: #{tpu_custom_call.1} parent=1 // pred_fallthru
      _
    // Predicated region
    $region106: #{tpu_custom_call.1} parent=1 // pred_check
      _
    $region107: #{tpu_custom_call.1} parent=1 // pred_check_branch
      %1821 = sbr.rel (0) target = $region109
    $region108: #{tpu_custom_call.1} parent=1 // pred_region
      %1822 = dma.done [#allocation4], 16
    $region109: #{tpu_custom_call.1} parent=1 // pred_fallthru
      _
    %1823 = vsyncpa [#allocation4], 1

</llo_original>
